<compile_context>
chip_gen: v6e
topology: v6e:2x2x1
jax: 0.10.0
libtpu: 0.0.40
codegen_flags: <defaults>
</compile_context>

<pallas_src>
import math
from functools import partial

import jax
import jax.numpy as jnp
from jax.experimental import pallas as pl
from jax.experimental.pallas import tpu as pltpu


def encoder_stack_kernel(x_ref, bias_ref,
                         wqkv_ref, wout_ref, bout_ref,
                         g1_ref, beta1_ref,
                         w1_ref, bf1_ref, w2_ref, bf2_ref,
                         g2_ref, beta2_ref,
                         o_ref, act_ref,
                         *, batch, seq, num_heads):
    """One grid step == one encoder layer applied to the whole (B*S, D) batch."""
    layer = pl.program_id(0)
    B, S, H = batch, seq, num_heads
    D = x_ref.shape[-1]
    dk = D // H

    # Layer 0: load the initial activation into the resident VMEM carry.
    @pl.when(layer == 0)
    def _():
        act_ref[...] = x_ref[...]

    x2d = act_ref[...]                         # (B*S, D) resident across layers
    bias = bias_ref[...]                       # (B, 1, S): 0.0 keep / -1e30 pad

    # ---- fused QKV projection (1/sqrt(dk) already folded into W_q) ----------
    qkv = jnp.dot(x2d, wqkv_ref[...], preferred_element_type=jnp.float32)  # (B*S, 3D)
    q = qkv[:, 0:D].reshape(B, S, D)
    k = qkv[:, D:2 * D].reshape(B, S, D)
    v = qkv[:, 2 * D:3 * D].reshape(B, S, D)

    # ---- attention: per-head (static unroll), batched over batch ------------
    ctx_parts = []
    for h in range(H):
        sl = slice(h * dk, (h + 1) * dk)
        s = jnp.einsum('bqd,bkd->bqk', q[:, :, sl], k[:, :, sl],
                       preferred_element_type=jnp.float32)            # (B, S, S)
        s = s + bias                                                   # key padding
        m = jnp.max(s, axis=-1, keepdims=True)
        e = jnp.exp(s - m)
        denom = jnp.sum(e, axis=-1, keepdims=True)
        pv = jnp.einsum('bqk,bkd->bqd', e, v[:, :, sl],
                        preferred_element_type=jnp.float32)            # (B, S, dk)
        ctx_parts.append(pv * pl.reciprocal(denom))                    # deferred norm
    ctx = jnp.concatenate(ctx_parts, axis=-1).reshape(B * S, D)        # concat heads

    # ---- single fused output projection --------------------------------------
    attn = jnp.dot(ctx, wout_ref[...], preferred_element_type=jnp.float32) + bout_ref[...]

    # ---- residual + LayerNorm1 ------------------------------------------------
    x1 = attn + x2d
    mu = jnp.mean(x1, axis=-1, keepdims=True)
    var = jnp.mean((x1 - mu) ** 2, axis=-1, keepdims=True)
    x1n = (x1 - mu) * jax.lax.rsqrt(var + 1e-5) * g1_ref[...] + beta1_ref[...]

    # ---- feed-forward ----------------------------------------------------------
    h1 = jnp.dot(x1n, w1_ref[...], preferred_element_type=jnp.float32) + bf1_ref[...]
    h1 = jnp.maximum(h1, 0.0)                                          # ReLU
    ff = jnp.dot(h1, w2_ref[...], preferred_element_type=jnp.float32) + bf2_ref[...]

    # ---- residual + LayerNorm2 --------------------------------------------------
    x2 = ff + x1n
    mu2 = jnp.mean(x2, axis=-1, keepdims=True)
    var2 = jnp.mean((x2 - mu2) ** 2, axis=-1, keepdims=True)
    y = (x2 - mu2) * jax.lax.rsqrt(var2 + 1e-5) * g2_ref[...] + beta2_ref[...]

    act_ref[...] = y                           # carry to the next layer (VMEM)

    @pl.when(layer == pl.num_programs(0) - 1)
    def _():
        o_ref[...] = y                         # single HBM writeback at the end


def encoder_pallas(x, padding_mask, block_params):
    """Full Encoder: one pallas_call over all layers."""
    B, S, D = x.shape
    L = len(block_params)
    H, _, dk = block_params[0]["wq"].shape
    E = block_params[0]["w1"].shape[1]
    scale = jnp.float32(1.0 / math.sqrt(dk))

    # ---- wrapper-side (free) weight fusion / stacking --------------------------
    wqkv_list, wout_list = [], []
    for p in block_params:
        wq = (p["wq"] * scale).transpose(1, 0, 2).reshape(D, H * dk)  # scale folded
        wk = p["wk"].transpose(1, 0, 2).reshape(D, H * dk)
        wv = p["wv"].transpose(1, 0, 2).reshape(D, H * dk)
        wqkv_list.append(jnp.concatenate([wq, wk, wv], axis=-1))      # (D, 3D)
        wout_list.append(p["wout"].reshape(H * dk, D))                # (H*dk, D)
    wqkv_all = jnp.stack(wqkv_list)                                   # (L, D, 3D)
    wout_all = jnp.stack(wout_list)                                   # (L, D, D)

    stack = lambda name: jnp.stack([p[name] for p in block_params])
    bout_all, g1_all, beta1_all = stack("bout"), stack("g1"), stack("beta1")
    w1_all, bf1_all = stack("w1"), stack("bf1")
    w2_all, bf2_all = stack("w2"), stack("bf2")
    g2_all, beta2_all = stack("g2"), stack("beta2")

    # additive key-padding bias, computed once (finite -> no inf-inf NaNs)
    bias = jnp.where(padding_mask, 0.0, -1e30).astype(jnp.float32)[:, None, :]  # (B,1,S)

    x2d = x.reshape(B * S, D)                  # fold batch into the matmul M dim

    kernel = partial(encoder_stack_kernel, batch=B, seq=S, num_heads=H)
    rep2 = lambda l: (0, 0)
    rep3 = lambda l: (0, 0, 0)
    per_layer = lambda l: (l, 0, 0)

    out2d = pl.pallas_call(
        kernel,
        out_shape=jax.ShapeDtypeStruct((B * S, D), jnp.float32),
        grid=(L,),
        in_specs=[
            pl.BlockSpec((B * S, D), rep2),            # initial activation
            pl.BlockSpec((B, 1, S), rep3),             # padding bias
            pl.BlockSpec((None, D, 3 * D), per_layer), # fused W_qkv
            pl.BlockSpec((None, D, D), per_layer),     # W_out
            pl.BlockSpec((None, 1, D), per_layer),     # b_out
            pl.BlockSpec((None, 1, D), per_layer),     # ln1 gamma
            pl.BlockSpec((None, 1, D), per_layer),     # ln1 beta
            pl.BlockSpec((None, D, E), per_layer),     # ffn W1
            pl.BlockSpec((None, 1, E), per_layer),     # ffn b1
            pl.BlockSpec((None, E, D), per_layer),     # ffn W2
            pl.BlockSpec((None, 1, D), per_layer),     # ffn b2
            pl.BlockSpec((None, 1, D), per_layer),     # ln2 gamma
            pl.BlockSpec((None, 1, D), per_layer),     # ln2 beta
        ],
        out_specs=pl.BlockSpec((B * S, D), rep2),
        scratch_shapes=[pltpu.VMEM((B * S, D), jnp.float32)],   # activation carry
        compiler_params=pltpu.CompilerParams(
            dimension_semantics=("arbitrary",)),
    )(x2d, bias,
      wqkv_all, wout_all, bout_all,
      g1_all, beta1_all,
      w1_all, bf1_all, w2_all, bf2_all,
      g2_all, beta2_all)

    return out2d.reshape(B, S, D)


# ------------------------- pure-JAX reference -------------------------------
def encoder_block_ref(x, padding_mask, p):
    H, _, dk = p["wq"].shape
    acc = jnp.zeros_like(x)
    for h in range(H):
        q = x @ p["wq"][h]
        k = x @ p["wk"][h]
        v = x @ p["wv"][h]
        s = jnp.einsum("bqd,bkd->bqk", q, k) / math.sqrt(dk)
        s = jnp.where(padding_mask[:, None, :], s, -jnp.inf)
        a = jax.nn.softmax(s, axis=-1)
        acc = acc + jnp.einsum("bqk,bkd->bqd", a, v) @ p["wout"][h]
    attn_out = acc + p["bout"]
    x1 = attn_out + x
    mu = jnp.mean(x1, -1, keepdims=True)
    var = jnp.mean((x1 - mu) ** 2, -1, keepdims=True)
    x1n = (x1 - mu) / jnp.sqrt(var + 1e-5) * p["g1"] + p["beta1"]
    h1 = jnp.maximum(x1n @ p["w1"] + p["bf1"], 0.0)
    ff = h1 @ p["w2"] + p["bf2"]
    x2 = ff + x1n
    mu2 = jnp.mean(x2, -1, keepdims=True)
    var2 = jnp.mean((x2 - mu2) ** 2, -1, keepdims=True)
    return (x2 - mu2) / jnp.sqrt(var2 + 1e-5) * p["g2"] + p["beta2"]


def encoder_ref(x, padding_mask, block_params):
    for p in block_params:
        x = encoder_block_ref(x, padding_mask, p)
    return x


# ----------------------- deterministic parameter init -----------------------
def init_block_params(key, model_dim, num_heads, expansion_dim):
    dk = model_dim // num_heads
    ks = jax.random.split(key, 10)
    n = lambda k, shape, scale: (scale * jax.random.normal(k, shape)).astype(jnp.float32)
    return {
        "wq":   n(ks[0], (num_heads, model_dim, dk), 1.0 / math.sqrt(model_dim)),
        "wk":   n(ks[1], (num_heads, model_dim, dk), 1.0 / math.sqrt(model_dim)),
        "wv":   n(ks[2], (num_heads, model_dim, dk), 1.0 / math.sqrt(model_dim)),
        "wout": n(ks[3], (num_heads, dk, model_dim), 1.0 / math.sqrt(model_dim)),
        "bout": n(ks[4], (1, model_dim), 0.02),
        "g1":   jnp.ones((1, model_dim), jnp.float32) + n(ks[5], (1, model_dim), 0.05),
        "beta1": n(ks[5], (1, model_dim), 0.02),
        "w1":   n(ks[6], (model_dim, expansion_dim), 1.0 / math.sqrt(model_dim)),
        "bf1":  n(ks[7], (1, expansion_dim), 0.02),
        "w2":   n(ks[8], (expansion_dim, model_dim), 1.0 / math.sqrt(expansion_dim)),
        "bf2":  n(ks[9], (1, model_dim), 0.02),
        "g2":   jnp.ones((1, model_dim), jnp.float32) + n(ks[9], (1, model_dim), 0.05),
        "beta2": n(ks[4], (1, model_dim), 0.02),
    }


if __name__ == "__main__":
    # Small shapes implied by the module's forward:
    B, S, D = 2, 8, 32           # batch, enc_seq_len, model_dim
    H, E = 4, 64                 # num_heads, expansion_dim
    NUM_BLOCKS = 2

    key = jax.random.PRNGKey(0)
    k_x, k_p = jax.random.split(key)
    x = jax.random.normal(k_x, (B, S, D), dtype=jnp.float32)

    # padding mask: batch 0 fully valid, batch 1 has 5 valid tokens
    lengths = jnp.array([S, 5])
    padding_mask = (jnp.arange(S)[None, :] < lengths[:, None])   # (B, S) bool

    block_params = [
        init_block_params(k, D, H, E)
        for k in jax.random.split(k_p, NUM_BLOCKS)
    ]

    out = encoder_pallas(x, padding_mask, block_params)
    out = jax.block_until_ready(out)

    ref = encoder_ref(x, padding_mask, block_params)
    assert out.shape == (B, S, D)
    assert jnp.allclose(out, ref, rtol=1e-4, atol=1e-4), (
        f"max abs diff {jnp.max(jnp.abs(out - ref))}")

    print("KERNEL_OK")
</pallas_src>

<mosaic_0001>
module attributes {stable_mosaic.version = 11 : i64} {
  func.func @encoder_stack_kernel(%arg0: i32, %arg1: memref<16x32xf32, #tpu.memory_space<vmem>>, %arg2: memref<2x1x8xf32, #tpu.memory_space<vmem>>, %arg3: memref<1x32x96xf32, #tpu.memory_space<vmem>>, %arg4: memref<1x32x32xf32, #tpu.memory_space<vmem>>, %arg5: memref<1x1x32xf32, #tpu.memory_space<vmem>>, %arg6: memref<1x1x32xf32, #tpu.memory_space<vmem>>, %arg7: memref<1x1x32xf32, #tpu.memory_space<vmem>>, %arg8: memref<1x32x64xf32, #tpu.memory_space<vmem>>, %arg9: memref<1x1x64xf32, #tpu.memory_space<vmem>>, %arg10: memref<1x64x32xf32, #tpu.memory_space<vmem>>, %arg11: memref<1x1x32xf32, #tpu.memory_space<vmem>>, %arg12: memref<1x1x32xf32, #tpu.memory_space<vmem>>, %arg13: memref<1x1x32xf32, #tpu.memory_space<vmem>>, %arg14: memref<16x32xf32, #tpu.memory_space<vmem>>, %arg15: memref<16x32xf32, #tpu.memory_space<vmem>>) attributes {dimension_semantics = [#tpu.dimension_semantics<arbitrary>], iteration_bounds = array<i64: 2>, scalar_prefetch = 0 : i64, scratch_operands = 1 : i64, tpu.core_type = #tpu.core_type<tc>, window_params = [{pipeline_mode = #tpu.pipeline_mode<synchronous>, transform_indices = @transform_0, window_bounds = array<i64: 16, 32>}, {pipeline_mode = #tpu.pipeline_mode<synchronous>, transform_indices = @transform_1, window_bounds = array<i64: 2, 1, 8>}, {transform_indices = @transform_2, window_bounds = array<i64: 1, 32, 96>}, {transform_indices = @transform_3, window_bounds = array<i64: 1, 32, 32>}, {transform_indices = @transform_4, window_bounds = array<i64: 1, 1, 32>}, {transform_indices = @transform_5, window_bounds = array<i64: 1, 1, 32>}, {transform_indices = @transform_6, window_bounds = array<i64: 1, 1, 32>}, {transform_indices = @transform_7, window_bounds = array<i64: 1, 32, 64>}, {transform_indices = @transform_8, window_bounds = array<i64: 1, 1, 64>}, {transform_indices = @transform_9, window_bounds = array<i64: 1, 64, 32>}, {transform_indices = @transform_10, window_bounds = array<i64: 1, 1, 32>}, {transform_indices = @transform_11, window_bounds = array<i64: 1, 1, 32>}, {transform_indices = @transform_12, window_bounds = array<i64: 1, 1, 32>}, {pipeline_mode = #tpu.pipeline_mode<synchronous>, transform_indices = @transform_13, window_bounds = array<i64: 16, 32>}]} {
    %c0_i32 = arith.constant 0 : i32
    %0 = arith.cmpi eq, %arg0, %c0_i32 : i32
    %1 = arith.extui %0 : i1 to i32
    %c0_i32_0 = arith.constant 0 : i32
    %2 = arith.cmpi ne, %1, %c0_i32_0 : i32
    scf.if %2 {
      %c0_71 = arith.constant 0 : index
      %c0_72 = arith.constant 0 : index
      %165 = vector.load %arg1[%c0_71, %c0_72] : memref<16x32xf32, #tpu.memory_space<vmem>>, vector<16x32xf32>
      %c0_73 = arith.constant 0 : index
      %c0_74 = arith.constant 0 : index
      %166 = vector.load %arg15[%c0_73, %c0_74] : memref<16x32xf32, #tpu.memory_space<vmem>>, vector<16x32xf32>
      tpu.vector_store %arg15[%c0_73, %c0_74], %165 {strides = array<i32>} : memref<16x32xf32, #tpu.memory_space<vmem>>, vector<16x32xf32>,
    } else {
    }
    %c0 = arith.constant 0 : index
    %c0_1 = arith.constant 0 : index
    %3 = vector.load %arg15[%c0, %c0_1] : memref<16x32xf32, #tpu.memory_space<vmem>>, vector<16x32xf32>
    %c0_2 = arith.constant 0 : index
    %c0_3 = arith.constant 0 : index
    %c0_4 = arith.constant 0 : index
    %4 = vector.load %arg2[%c0_2, %c0_3, %c0_4] : memref<2x1x8xf32, #tpu.memory_space<vmem>>, vector<2x1x8xf32>
    %c0_5 = arith.constant 0 : index
    %c0_6 = arith.constant 0 : index
    %c0_7 = arith.constant 0 : index
    %5 = vector.load %arg3[%c0_5, %c0_6, %c0_7] : memref<1x32x96xf32, #tpu.memory_space<vmem>>, vector<1x32x96xf32>
    %6 = vector.shape_cast %5 : vector<1x32x96xf32> to vector<32x96xf32>
    %cst = arith.constant dense<0.000000e+00> : vector<16x96xf32>
    %7 = tpu.matmul %3, %6, %cst {dimension_numbers = #tpu.dot_dimension_numbers<[1], [0], [0], [1], [0, 0, 1, 1], [], []>} : vector<16x32xf32>, vector<32x96xf32>, vector<16x96xf32> -> vector<16x96xf32>
    %8 = vector.extract_strided_slice %7 {offsets = [0, 0], sizes = [16, 32], strides = [1, 1]} : vector<16x96xf32> to vector<16x32xf32>
    %9 = vector.shape_cast %8 : vector<16x32xf32> to vector<2x8x32xf32>
    %10 = vector.extract_strided_slice %7 {offsets = [0, 32], sizes = [16, 32], strides = [1, 1]} : vector<16x96xf32> to vector<16x32xf32>
    %11 = vector.shape_cast %10 : vector<16x32xf32> to vector<2x8x32xf32>
    %12 = vector.extract_strided_slice %7 {offsets = [0, 64], sizes = [16, 32], strides = [1, 1]} : vector<16x96xf32> to vector<16x32xf32>
    %13 = vector.shape_cast %12 : vector<16x32xf32> to vector<2x8x32xf32>
    %14 = vector.extract_strided_slice %9 {offsets = [0, 0, 0], sizes = [2, 8, 8], strides = [1, 1, 1]} : vector<2x8x32xf32> to vector<2x8x8xf32>
    %15 = vector.extract_strided_slice %11 {offsets = [0, 0, 0], sizes = [2, 8, 8], strides = [1, 1, 1]} : vector<2x8x32xf32> to vector<2x8x8xf32>
    "tpu.trace_start"() <{level = 10 : i32, message = "bqd,bkd->bqk"}> : () -> ()
    %cst_8 = arith.constant dense<0.000000e+00> : vector<2x8x8xf32>
    %16 = tpu.matmul %14, %15, %cst_8 {dimension_numbers = #tpu.dot_dimension_numbers<[2], [2], [1], [1], [0, 0, 0, 1, 1, 1], [0], [0]>} : vector<2x8x8xf32>, vector<2x8x8xf32>, vector<2x8x8xf32> -> vector<2x8x8xf32>
    "tpu.trace_stop"() : () -> ()
    %17 = vector.broadcast %4 : vector<2x1x8xf32> to vector<2x8x8xf32>
    %18 = arith.addf %16, %17 : vector<2x8x8xf32>
    %cst_9 = arith.constant dense<0xFF800000> : vector<2x8xf32>
    %19 = vector.multi_reduction <maximumf>, %18, %cst_9 [2] : vector<2x8x8xf32> to vector<2x8xf32>
    %20 = vector.shape_cast %19 : vector<2x8xf32> to vector<2x8x1xf32>
    %21 = vector.broadcast %20 : vector<2x8x1xf32> to vector<2x8x8xf32>
    %22 = arith.subf %18, %21 : vector<2x8x8xf32>
    %23 = math.exp %22 : vector<2x8x8xf32>
    %cst_10 = arith.constant dense<0.000000e+00> : vector<2x8xf32>
    %24 = vector.multi_reduction <add>, %23, %cst_10 [2] : vector<2x8x8xf32> to vector<2x8xf32>
    %25 = vector.shape_cast %24 : vector<2x8xf32> to vector<2x8x1xf32>
    %26 = vector.extract_strided_slice %13 {offsets = [0, 0, 0], sizes = [2, 8, 8], strides = [1, 1, 1]} : vector<2x8x32xf32> to vector<2x8x8xf32>
    "tpu.trace_start"() <{level = 10 : i32, message = "bqk,bkd->bqd"}> : () -> ()
    %cst_11 = arith.constant dense<0.000000e+00> : vector<2x8x8xf32>
    %27 = tpu.matmul %23, %26, %cst_11 {dimension_numbers = #tpu.dot_dimension_numbers<[2], [1], [1], [2], [0, 0, 0, 1, 1, 2], [0], [0]>} : vector<2x8x8xf32>, vector<2x8x8xf32>, vector<2x8x8xf32> -> vector<2x8x8xf32>
    "tpu.trace_stop"() : () -> ()
    %28 = tpu.reciprocal %25 : vector<2x8x1xf32> -> vector<2x8x1xf32>
    %29 = vector.broadcast %28 : vector<2x8x1xf32> to vector<2x8x8xf32>
    %30 = arith.mulf %27, %29 : vector<2x8x8xf32>
    %31 = vector.extract_strided_slice %9 {offsets = [0, 0, 8], sizes = [2, 8, 8], strides = [1, 1, 1]} : vector<2x8x32xf32> to vector<2x8x8xf32>
    %32 = vector.extract_strided_slice %11 {offsets = [0, 0, 8], sizes = [2, 8, 8], strides = [1, 1, 1]} : vector<2x8x32xf32> to vector<2x8x8xf32>
    "tpu.trace_start"() <{level = 10 : i32, message = "bqd,bkd->bqk"}> : () -> ()
    %cst_12 = arith.constant dense<0.000000e+00> : vector<2x8x8xf32>
    %33 = tpu.matmul %31, %32, %cst_12 {dimension_numbers = #tpu.dot_dimension_numbers<[2], [2], [1], [1], [0, 0, 0, 1, 1, 1], [0], [0]>} : vector<2x8x8xf32>, vector<2x8x8xf32>, vector<2x8x8xf32> -> vector<2x8x8xf32>
    "tpu.trace_stop"() : () -> ()
    %34 = vector.broadcast %4 : vector<2x1x8xf32> to vector<2x8x8xf32>
    %35 = arith.addf %33, %34 : vector<2x8x8xf32>
    %cst_13 = arith.constant dense<0xFF800000> : vector<2x8xf32>
    %36 = vector.multi_reduction <maximumf>, %35, %cst_13 [2] : vector<2x8x8xf32> to vector<2x8xf32>
    %37 = vector.shape_cast %36 : vector<2x8xf32> to vector<2x8x1xf32>
    %38 = vector.broadcast %37 : vector<2x8x1xf32> to vector<2x8x8xf32>
    %39 = arith.subf %35, %38 : vector<2x8x8xf32>
    %40 = math.exp %39 : vector<2x8x8xf32>
    %cst_14 = arith.constant dense<0.000000e+00> : vector<2x8xf32>
    %41 = vector.multi_reduction <add>, %40, %cst_14 [2] : vector<2x8x8xf32> to vector<2x8xf32>
    %42 = vector.shape_cast %41 : vector<2x8xf32> to vector<2x8x1xf32>
    %43 = vector.extract_strided_slice %13 {offsets = [0, 0, 8], sizes = [2, 8, 8], strides = [1, 1, 1]} : vector<2x8x32xf32> to vector<2x8x8xf32>
    "tpu.trace_start"() <{level = 10 : i32, message = "bqk,bkd->bqd"}> : () -> ()
    %cst_15 = arith.constant dense<0.000000e+00> : vector<2x8x8xf32>
    %44 = tpu.matmul %40, %43, %cst_15 {dimension_numbers = #tpu.dot_dimension_numbers<[2], [1], [1], [2], [0, 0, 0, 1, 1, 2], [0], [0]>} : vector<2x8x8xf32>, vector<2x8x8xf32>, vector<2x8x8xf32> -> vector<2x8x8xf32>
    "tpu.trace_stop"() : () -> ()
    %45 = tpu.reciprocal %42 : vector<2x8x1xf32> -> vector<2x8x1xf32>
    %46 = vector.broadcast %45 : vector<2x8x1xf32> to vector<2x8x8xf32>
    %47 = arith.mulf %44, %46 : vector<2x8x8xf32>
    %48 = vector.extract_strided_slice %9 {offsets = [0, 0, 16], sizes = [2, 8, 8], strides = [1, 1, 1]} : vector<2x8x32xf32> to vector<2x8x8xf32>
    %49 = vector.extract_strided_slice %11 {offsets = [0, 0, 16], sizes = [2, 8, 8], strides = [1, 1, 1]} : vector<2x8x32xf32> to vector<2x8x8xf32>
    "tpu.trace_start"() <{level = 10 : i32, message = "bqd,bkd->bqk"}> : () -> ()
    %cst_16 = arith.constant dense<0.000000e+00> : vector<2x8x8xf32>
    %50 = tpu.matmul %48, %49, %cst_16 {dimension_numbers = #tpu.dot_dimension_numbers<[2], [2], [1], [1], [0, 0, 0, 1, 1, 1], [0], [0]>} : vector<2x8x8xf32>, vector<2x8x8xf32>, vector<2x8x8xf32> -> vector<2x8x8xf32>
    "tpu.trace_stop"() : () -> ()
    %51 = vector.broadcast %4 : vector<2x1x8xf32> to vector<2x8x8xf32>
    %52 = arith.addf %50, %51 : vector<2x8x8xf32>
    %cst_17 = arith.constant dense<0xFF800000> : vector<2x8xf32>
    %53 = vector.multi_reduction <maximumf>, %52, %cst_17 [2] : vector<2x8x8xf32> to vector<2x8xf32>
    %54 = vector.shape_cast %53 : vector<2x8xf32> to vector<2x8x1xf32>
    %55 = vector.broadcast %54 : vector<2x8x1xf32> to vector<2x8x8xf32>
    %56 = arith.subf %52, %55 : vector<2x8x8xf32>
    %57 = math.exp %56 : vector<2x8x8xf32>
    %cst_18 = arith.constant dense<0.000000e+00> : vector<2x8xf32>
    %58 = vector.multi_reduction <add>, %57, %cst_18 [2] : vector<2x8x8xf32> to vector<2x8xf32>
    %59 = vector.shape_cast %58 : vector<2x8xf32> to vector<2x8x1xf32>
    %60 = vector.extract_strided_slice %13 {offsets = [0, 0, 16], sizes = [2, 8, 8], strides = [1, 1, 1]} : vector<2x8x32xf32> to vector<2x8x8xf32>
    "tpu.trace_start"() <{level = 10 : i32, message = "bqk,bkd->bqd"}> : () -> ()
    %cst_19 = arith.constant dense<0.000000e+00> : vector<2x8x8xf32>
    %61 = tpu.matmul %57, %60, %cst_19 {dimension_numbers = #tpu.dot_dimension_numbers<[2], [1], [1], [2], [0, 0, 0, 1, 1, 2], [0], [0]>} : vector<2x8x8xf32>, vector<2x8x8xf32>, vector<2x8x8xf32> -> vector<2x8x8xf32>
    "tpu.trace_stop"() : () -> ()
    %62 = tpu.reciprocal %59 : vector<2x8x1xf32> -> vector<2x8x1xf32>
    %63 = vector.broadcast %62 : vector<2x8x1xf32> to vector<2x8x8xf32>
    %64 = arith.mulf %61, %63 : vector<2x8x8xf32>
    %65 = vector.extract_strided_slice %9 {offsets = [0, 0, 24], sizes = [2, 8, 8], strides = [1, 1, 1]} : vector<2x8x32xf32> to vector<2x8x8xf32>
    %66 = vector.extract_strided_slice %11 {offsets = [0, 0, 24], sizes = [2, 8, 8], strides = [1, 1, 1]} : vector<2x8x32xf32> to vector<2x8x8xf32>
    "tpu.trace_start"() <{level = 10 : i32, message = "bqd,bkd->bqk"}> : () -> ()
    %cst_20 = arith.constant dense<0.000000e+00> : vector<2x8x8xf32>
    %67 = tpu.matmul %65, %66, %cst_20 {dimension_numbers = #tpu.dot_dimension_numbers<[2], [2], [1], [1], [0, 0, 0, 1, 1, 1], [0], [0]>} : vector<2x8x8xf32>, vector<2x8x8xf32>, vector<2x8x8xf32> -> vector<2x8x8xf32>
    "tpu.trace_stop"() : () -> ()
    %68 = vector.broadcast %4 : vector<2x1x8xf32> to vector<2x8x8xf32>
    %69 = arith.addf %67, %68 : vector<2x8x8xf32>
    %cst_21 = arith.constant dense<0xFF800000> : vector<2x8xf32>
    %70 = vector.multi_reduction <maximumf>, %69, %cst_21 [2] : vector<2x8x8xf32> to vector<2x8xf32>
    %71 = vector.shape_cast %70 : vector<2x8xf32> to vector<2x8x1xf32>
    %72 = vector.broadcast %71 : vector<2x8x1xf32> to vector<2x8x8xf32>
    %73 = arith.subf %69, %72 : vector<2x8x8xf32>
    %74 = math.exp %73 : vector<2x8x8xf32>
    %cst_22 = arith.constant dense<0.000000e+00> : vector<2x8xf32>
    %75 = vector.multi_reduction <add>, %74, %cst_22 [2] : vector<2x8x8xf32> to vector<2x8xf32>
    %76 = vector.shape_cast %75 : vector<2x8xf32> to vector<2x8x1xf32>
    %77 = vector.extract_strided_slice %13 {offsets = [0, 0, 24], sizes = [2, 8, 8], strides = [1, 1, 1]} : vector<2x8x32xf32> to vector<2x8x8xf32>
    "tpu.trace_start"() <{level = 10 : i32, message = "bqk,bkd->bqd"}> : () -> ()
    %cst_23 = arith.constant dense<0.000000e+00> : vector<2x8x8xf32>
    %78 = tpu.matmul %74, %77, %cst_23 {dimension_numbers = #tpu.dot_dimension_numbers<[2], [1], [1], [2], [0, 0, 0, 1, 1, 2], [0], [0]>} : vector<2x8x8xf32>, vector<2x8x8xf32>, vector<2x8x8xf32> -> vector<2x8x8xf32>
    "tpu.trace_stop"() : () -> ()
    %79 = tpu.reciprocal %76 : vector<2x8x1xf32> -> vector<2x8x1xf32>
    %80 = vector.broadcast %79 : vector<2x8x1xf32> to vector<2x8x8xf32>
    %81 = arith.mulf %78, %80 : vector<2x8x8xf32>
    %82 = tpu.concatenate %30, %47, %64, %81 in 2 : vector<2x8x8xf32>, vector<2x8x8xf32>, vector<2x8x8xf32>, vector<2x8x8xf32> -> vector<2x8x32xf32>
    %83 = vector.shape_cast %82 : vector<2x8x32xf32> to vector<16x32xf32>
    %c0_24 = arith.constant 0 : index
    %c0_25 = arith.constant 0 : index
    %c0_26 = arith.constant 0 : index
    %84 = vector.load %arg4[%c0_24, %c0_25, %c0_26] : memref<1x32x32xf32, #tpu.memory_space<vmem>>, vector<1x32x32xf32>
    %85 = vector.shape_cast %84 : vector<1x32x32xf32> to vector<32x32xf32>
    %cst_27 = arith.constant dense<0.000000e+00> : vector<16x32xf32>
    %86 = tpu.matmul %83, %85, %cst_27 {dimension_numbers = #tpu.dot_dimension_numbers<[1], [0], [0], [1], [0, 0, 1, 1], [], []>} : vector<16x32xf32>, vector<32x32xf32>, vector<16x32xf32> -> vector<16x32xf32>
    %c0_28 = arith.constant 0 : index
    %c0_29 = arith.constant 0 : index
    %c0_30 = arith.constant 0 : index
    %87 = vector.load %arg5[%c0_28, %c0_29, %c0_30] : memref<1x1x32xf32, #tpu.memory_space<vmem>>, vector<1x1x32xf32>
    %88 = vector.shape_cast %87 : vector<1x1x32xf32> to vector<1x32xf32>
    %89 = vector.broadcast %88 : vector<1x32xf32> to vector<16x32xf32>
    %90 = arith.addf %86, %89 : vector<16x32xf32>
    %91 = arith.addf %90, %3 : vector<16x32xf32>
    %cst_31 = arith.constant dense<0.000000e+00> : vector<16xf32>
    %92 = vector.multi_reduction <add>, %91, %cst_31 [1] : vector<16x32xf32> to vector<16xf32>
    %93 = vector.shape_cast %92 : vector<16xf32> to vector<16x1xf32>
    %cst_32 = arith.constant 3.200000e+01 : f32
    %94 = vector.broadcast %cst_32 : f32 to vector<16x1xf32>
    %95 = arith.divf %93, %94 : vector<16x1xf32>
    %96 = vector.broadcast %95 : vector<16x1xf32> to vector<16x32xf32>
    %97 = arith.subf %91, %96 : vector<16x32xf32>
    %98 = arith.mulf %97, %97 : vector<16x32xf32>
    %cst_33 = arith.constant dense<0.000000e+00> : vector<16xf32>
    %99 = vector.multi_reduction <add>, %98, %cst_33 [1] : vector<16x32xf32> to vector<16xf32>
    %100 = vector.shape_cast %99 : vector<16xf32> to vector<16x1xf32>
    %cst_34 = arith.constant 3.200000e+01 : f32
    %101 = vector.broadcast %cst_34 : f32 to vector<16x1xf32>
    %102 = arith.divf %100, %101 : vector<16x1xf32>
    %103 = vector.broadcast %95 : vector<16x1xf32> to vector<16x32xf32>
    %104 = arith.subf %91, %103 : vector<16x32xf32>
    %cst_35 = arith.constant 9.99999974E-6 : f32
    %105 = vector.broadcast %cst_35 : f32 to vector<16x1xf32>
    %106 = arith.addf %102, %105 : vector<16x1xf32>
    %107 = math.rsqrt %106 : vector<16x1xf32>
    %108 = vector.broadcast %107 : vector<16x1xf32> to vector<16x32xf32>
    %109 = arith.mulf %104, %108 : vector<16x32xf32>
    %c0_36 = arith.constant 0 : index
    %c0_37 = arith.constant 0 : index
    %c0_38 = arith.constant 0 : index
    %110 = vector.load %arg6[%c0_36, %c0_37, %c0_38] : memref<1x1x32xf32, #tpu.memory_space<vmem>>, vector<1x1x32xf32>
    %111 = vector.shape_cast %110 : vector<1x1x32xf32> to vector<1x32xf32>
    %112 = vector.broadcast %111 : vector<1x32xf32> to vector<16x32xf32>
    %113 = arith.mulf %109, %112 : vector<16x32xf32>
    %c0_39 = arith.constant 0 : index
    %c0_40 = arith.constant 0 : index
    %c0_41 = arith.constant 0 : index
    %114 = vector.load %arg7[%c0_39, %c0_40, %c0_41] : memref<1x1x32xf32, #tpu.memory_space<vmem>>, vector<1x1x32xf32>
    %115 = vector.shape_cast %114 : vector<1x1x32xf32> to vector<1x32xf32>
    %116 = vector.broadcast %115 : vector<1x32xf32> to vector<16x32xf32>
    %117 = arith.addf %113, %116 : vector<16x32xf32>
    %c0_42 = arith.constant 0 : index
    %c0_43 = arith.constant 0 : index
    %c0_44 = arith.constant 0 : index
    %118 = vector.load %arg8[%c0_42, %c0_43, %c0_44] : memref<1x32x64xf32, #tpu.memory_space<vmem>>, vector<1x32x64xf32>
    %119 = vector.shape_cast %118 : vector<1x32x64xf32> to vector<32x64xf32>
    %cst_45 = arith.constant dense<0.000000e+00> : vector<16x64xf32>
    %120 = tpu.matmul %117, %119, %cst_45 {dimension_numbers = #tpu.dot_dimension_numbers<[1], [0], [0], [1], [0, 0, 1, 1], [], []>} : vector<16x32xf32>, vector<32x64xf32>, vector<16x64xf32> -> vector<16x64xf32>
    %c0_46 = arith.constant 0 : index
    %c0_47 = arith.constant 0 : index
    %c0_48 = arith.constant 0 : index
    %121 = vector.load %arg9[%c0_46, %c0_47, %c0_48] : memref<1x1x64xf32, #tpu.memory_space<vmem>>, vector<1x1x64xf32>
    %122 = vector.shape_cast %121 : vector<1x1x64xf32> to vector<1x64xf32>
    %123 = vector.broadcast %122 : vector<1x64xf32> to vector<16x64xf32>
    %124 = arith.addf %120, %123 : vector<16x64xf32>
    %cst_49 = arith.constant 0.000000e+00 : f32
    %125 = vector.broadcast %cst_49 : f32 to vector<16x64xf32>
    %126 = arith.maximumf %124, %125 : vector<16x64xf32>
    %c0_50 = arith.constant 0 : index
    %c0_51 = arith.constant 0 : index
    %c0_52 = arith.constant 0 : index
    %127 = vector.load %arg10[%c0_50, %c0_51, %c0_52] : memref<1x64x32xf32, #tpu.memory_space<vmem>>, vector<1x64x32xf32>
    %128 = vector.shape_cast %127 : vector<1x64x32xf32> to vector<64x32xf32>
    %cst_53 = arith.constant dense<0.000000e+00> : vector<16x32xf32>
    %129 = tpu.matmul %126, %128, %cst_53 {dimension_numbers = #tpu.dot_dimension_numbers<[1], [0], [0], [1], [0, 0, 1, 1], [], []>} : vector<16x64xf32>, vector<64x32xf32>, vector<16x32xf32> -> vector<16x32xf32>
    %c0_54 = arith.constant 0 : index
    %c0_55 = arith.constant 0 : index
    %c0_56 = arith.constant 0 : index
    %130 = vector.load %arg11[%c0_54, %c0_55, %c0_56] : memref<1x1x32xf32, #tpu.memory_space<vmem>>, vector<1x1x32xf32>
    %131 = vector.shape_cast %130 : vector<1x1x32xf32> to vector<1x32xf32>
    %132 = vector.broadcast %131 : vector<1x32xf32> to vector<16x32xf32>
    %133 = arith.addf %129, %132 : vector<16x32xf32>
    %134 = arith.addf %133, %117 : vector<16x32xf32>
    %cst_57 = arith.constant dense<0.000000e+00> : vector<16xf32>
    %135 = vector.multi_reduction <add>, %134, %cst_57 [1] : vector<16x32xf32> to vector<16xf32>
    %136 = vector.shape_cast %135 : vector<16xf32> to vector<16x1xf32>
    %cst_58 = arith.constant 3.200000e+01 : f32
    %137 = vector.broadcast %cst_58 : f32 to vector<16x1xf32>
    %138 = arith.divf %136, %137 : vector<16x1xf32>
    %139 = vector.broadcast %138 : vector<16x1xf32> to vector<16x32xf32>
    %140 = arith.subf %134, %139 : vector<16x32xf32>
    %141 = arith.mulf %140, %140 : vector<16x32xf32>
    %cst_59 = arith.constant dense<0.000000e+00> : vector<16xf32>
    %142 = vector.multi_reduction <add>, %141, %cst_59 [1] : vector<16x32xf32> to vector<16xf32>
    %143 = vector.shape_cast %142 : vector<16xf32> to vector<16x1xf32>
    %cst_60 = arith.constant 3.200000e+01 : f32
    %144 = vector.broadcast %cst_60 : f32 to vector<16x1xf32>
    %145 = arith.divf %143, %144 : vector<16x1xf32>
    %146 = vector.broadcast %138 : vector<16x1xf32> to vector<16x32xf32>
    %147 = arith.subf %134, %146 : vector<16x32xf32>
    %cst_61 = arith.constant 9.99999974E-6 : f32
    %148 = vector.broadcast %cst_61 : f32 to vector<16x1xf32>
    %149 = arith.addf %145, %148 : vector<16x1xf32>
    %150 = math.rsqrt %149 : vector<16x1xf32>
    %151 = vector.broadcast %150 : vector<16x1xf32> to vector<16x32xf32>
    %152 = arith.mulf %147, %151 : vector<16x32xf32>
    %c0_62 = arith.constant 0 : index
    %c0_63 = arith.constant 0 : index
    %c0_64 = arith.constant 0 : index
    %153 = vector.load %arg12[%c0_62, %c0_63, %c0_64] : memref<1x1x32xf32, #tpu.memory_space<vmem>>, vector<1x1x32xf32>
    %154 = vector.shape_cast %153 : vector<1x1x32xf32> to vector<1x32xf32>
    %155 = vector.broadcast %154 : vector<1x32xf32> to vector<16x32xf32>
    %156 = arith.mulf %152, %155 : vector<16x32xf32>
    %c0_65 = arith.constant 0 : index
    %c0_66 = arith.constant 0 : index
    %c0_67 = arith.constant 0 : index
    %157 = vector.load %arg13[%c0_65, %c0_66, %c0_67] : memref<1x1x32xf32, #tpu.memory_space<vmem>>, vector<1x1x32xf32>
    %158 = vector.shape_cast %157 : vector<1x1x32xf32> to vector<1x32xf32>
    %159 = vector.broadcast %158 : vector<1x32xf32> to vector<16x32xf32>
    %160 = arith.addf %156, %159 : vector<16x32xf32>
    %c0_68 = arith.constant 0 : index
    %c0_69 = arith.constant 0 : index
    %161 = vector.load %arg15[%c0_68, %c0_69] : memref<16x32xf32, #tpu.memory_space<vmem>>, vector<16x32xf32>
    tpu.vector_store %arg15[%c0_68, %c0_69], %160 {strides = array<i32>} : memref<16x32xf32, #tpu.memory_space<vmem>>, vector<16x32xf32>,
    %c1_i32 = arith.constant 1 : i32
    %162 = arith.cmpi eq, %arg0, %c1_i32 : i32
    %163 = arith.extui %162 : i1 to i32
    %c0_i32_70 = arith.constant 0 : i32
    %164 = arith.cmpi ne, %163, %c0_i32_70 : i32
    scf.if %164 {
      %c0_71 = arith.constant 0 : index
      %c0_72 = arith.constant 0 : index
      %165 = vector.load %arg14[%c0_71, %c0_72] : memref<16x32xf32, #tpu.memory_space<vmem>>, vector<16x32xf32>
      tpu.vector_store %arg14[%c0_71, %c0_72], %160 {strides = array<i32>} : memref<16x32xf32, #tpu.memory_space<vmem>>, vector<16x32xf32>,
    } else {
    }
    return
  }
  func.func @transform_0(%arg0: i32) -> (i32, i32) {
    %c0_i32 = arith.constant 0 : i32
    %c0_i32_0 = arith.constant 0 : i32
    %c0_i32_1 = arith.constant 0 : i32
    return %c0_i32, %c0_i32_0 : i32, i32
  }
  func.func @transform_1(%arg0: i32) -> (i32, i32, i32) {
    %c0_i32 = arith.constant 0 : i32
    %c0_i32_0 = arith.constant 0 : i32
    %c0_i32_1 = arith.constant 0 : i32
    %c0_i32_2 = arith.constant 0 : i32
    return %c0_i32, %c0_i32_0, %c0_i32_1 : i32, i32, i32
  }
  func.func @transform_2(%arg0: i32) -> (i32, i32, i32) {
    %c0_i32 = arith.constant 0 : i32
    %c0_i32_0 = arith.constant 0 : i32
    %c0_i32_1 = arith.constant 0 : i32
    return %arg0, %c0_i32, %c0_i32_0 : i32, i32, i32
  }
  func.func @transform_3(%arg0: i32) -> (i32, i32, i32) {
    %c0_i32 = arith.constant 0 : i32
    %c0_i32_0 = arith.constant 0 : i32
    %c0_i32_1 = arith.constant 0 : i32
    return %arg0, %c0_i32, %c0_i32_0 : i32, i32, i32
  }
  func.func @transform_4(%arg0: i32) -> (i32, i32, i32) {
    %c0_i32 = arith.constant 0 : i32
    %c0_i32_0 = arith.constant 0 : i32
    %c0_i32_1 = arith.constant 0 : i32
    return %arg0, %c0_i32, %c0_i32_0 : i32, i32, i32
  }
  func.func @transform_5(%arg0: i32) -> (i32, i32, i32) {
    %c0_i32 = arith.constant 0 : i32
    %c0_i32_0 = arith.constant 0 : i32
    %c0_i32_1 = arith.constant 0 : i32
    return %arg0, %c0_i32, %c0_i32_0 : i32, i32, i32
  }
  func.func @transform_6(%arg0: i32) -> (i32, i32, i32) {
    %c0_i32 = arith.constant 0 : i32
    %c0_i32_0 = arith.constant 0 : i32
    %c0_i32_1 = arith.constant 0 : i32
    return %arg0, %c0_i32, %c0_i32_0 : i32, i32, i32
  }
  func.func @transform_7(%arg0: i32) -> (i32, i32, i32) {
    %c0_i32 = arith.constant 0 : i32
    %c0_i32_0 = arith.constant 0 : i32
    %c0_i32_1 = arith.constant 0 : i32
    return %arg0, %c0_i32, %c0_i32_0 : i32, i32, i32
  }
  func.func @transform_8(%arg0: i32) -> (i32, i32, i32) {
    %c0_i32 = arith.constant 0 : i32
    %c0_i32_0 = arith.constant 0 : i32
    %c0_i32_1 = arith.constant 0 : i32
    return %arg0, %c0_i32, %c0_i32_0 : i32, i32, i32
  }
  func.func @transform_9(%arg0: i32) -> (i32, i32, i32) {
    %c0_i32 = arith.constant 0 : i32
    %c0_i32_0 = arith.constant 0 : i32
    %c0_i32_1 = arith.constant 0 : i32
    return %arg0, %c0_i32, %c0_i32_0 : i32, i32, i32
  }
  func.func @transform_10(%arg0: i32) -> (i32, i32, i32) {
    %c0_i32 = arith.constant 0 : i32
    %c0_i32_0 = arith.constant 0 : i32
    %c0_i32_1 = arith.constant 0 : i32
    return %arg0, %c0_i32, %c0_i32_0 : i32, i32, i32
  }
  func.func @transform_11(%arg0: i32) -> (i32, i32, i32) {
    %c0_i32 = arith.constant 0 : i32
    %c0_i32_0 = arith.constant 0 : i32
    %c0_i32_1 = arith.constant 0 : i32
    return %arg0, %c0_i32, %c0_i32_0 : i32, i32, i32
  }
  func.func @transform_12(%arg0: i32) -> (i32, i32, i32) {
    %c0_i32 = arith.constant 0 : i32
    %c0_i32_0 = arith.constant 0 : i32
    %c0_i32_1 = arith.constant 0 : i32
    return %arg0, %c0_i32, %c0_i32_0 : i32, i32, i32
  }
  func.func @transform_13(%arg0: i32) -> (i32, i32) {
    %c0_i32 = arith.constant 0 : i32
    %c0_i32_0 = arith.constant 0 : i32
    %c0_i32_1 = arith.constant 0 : i32
    return %c0_i32, %c0_i32_0 : i32, i32
  }
}

</mosaic_0001>

<llo_original>
// kernel: tpu_custom_call.1
$region0: #{tpu_custom_call.1}
  #allocation0 [shape = 'u32[]', space=smem, size = 0x4, offset = 0x4, fixed_abs, tag = 'smem constant byte address 0x4 - core index']
  #allocation1 [shape = 'u32[144,128]{1,0:T(1,128)}', space=vmem, size = 0x12000, scoped, tag = 'internal scratch']
  #allocation2 [shape = 'f32[16,32]{1,0:T(8,128)}', space=vmem, size = 0x2000, scoped, tag = 'scratch operand']
  %s0 = inlined_call_operand.hbm [shape: f32[16,32], index: 0, kind: input, shape index: {}]
  %s1 = inlined_call_operand.hbm [shape: f32[2,1,8], index: 1, kind: input, shape index: {}]
  %s2 = inlined_call_operand.vmem [shape: f32[2,32,96], index: 2, kind: input, shape index: {}]
  %s3 = inlined_call_operand.vmem [shape: f32[2,32,32], index: 3, kind: input, shape index: {}]
  %s4 = inlined_call_operand.vmem [shape: f32[2,1,32], index: 4, kind: input, shape index: {}]
  %s5 = inlined_call_operand.vmem [shape: f32[2,1,32], index: 5, kind: input, shape index: {}]
  %s6 = inlined_call_operand.vmem [shape: f32[2,1,32], index: 6, kind: input, shape index: {}]
  %s7 = inlined_call_operand.vmem [shape: f32[2,32,64], index: 7, kind: input, shape index: {}]
  %s8 = inlined_call_operand.vmem [shape: f32[2,1,64], index: 8, kind: input, shape index: {}]
  %s9 = inlined_call_operand.vmem [shape: f32[2,64,32], index: 9, kind: input, shape index: {}]
  %s10 = inlined_call_operand.vmem [shape: f32[2,1,32], index: 10, kind: input, shape index: {}]
  %s11 = inlined_call_operand.vmem [shape: f32[2,1,32], index: 11, kind: input, shape index: {}]
  %s12 = inlined_call_operand.vmem [shape: f32[2,1,32], index: 12, kind: input, shape index: {}]
  %s13 = inlined_call_operand.hbm [shape: f32[16,32], index: 13, kind: output, shape index: {}]
  %s14 = sld [smem:[#allocation0]]
  $region101: #{tpu_custom_call.1} parent=0
    _
  %s16 = ssub.s32 1, %s14
  %s17 = scalar_select 0, %s16, %s14
  $region1: #{tpu_custom_call.1} parent=0
    #allocation3 [shape = 'u8[8192]{0}', space=vmem, size = 0x2000, scoped, tag = 'input window, operand 0, single buffered']
    #allocation4 [shape = 's32[2]{0}', space=sflag, size = 0x8, scoped, tag = 'scoped memory for tpu_custom_call.1']
    #allocation5 [shape = 's32[2]{0}', space=sflag, size = 0x8, scoped, tag = 'scoped memory for tpu_custom_call.1']
    #allocation6 [shape = 'u8[1024]{0}', space=vmem, size = 0x400, scoped, tag = 'input window, operand 1, single buffered']
    #allocation7 [shape = 's32[1]{0}', space=sflag, size = 0x4, scoped, tag = 'scoped memory for tpu_custom_call.1']
    #allocation8 [shape = 'u8[8192]{0}', space=vmem, size = 0x2000, scoped, tag = 'output window, operand 0, single buffered']
    %18 = vsyncpa [#allocation4], 0
    %19 = vsyncpa [#allocation7], 0
    %20 = vsyncpa [#allocation5], 0
    loop: start=0, step=1, limit=4
    $region2: #{tpu_custom_call.1} parent=1 // loop_pre_header
      _
    $region3: #{tpu_custom_call.1} parent=1 // loop_header
      %s22 = sphi 0, %s26
      %p23 = scmp.ge.s32.totalorder %s22, 4
      %s30 = sphi 0, %s30
      %s32 = sphi 0, %s30
      %s33 = sphi 0, %s32
      %s47 = sphi 0, %s33
      %s51 = sphi 0, %s51
      %s53 = sphi 0, %s51
      %s54 = sphi 0, %s53
      %s68 = sphi 0, %s54
      %s74 = sphi 0, %s76
      %s77 = sphi 0, %s74
      %s78 = sphi 0, %s77
      %s94 = sphi 0, %s78
      %s100 = sphi 0, %s102
      %s103 = sphi 0, %s100
      %s104 = sphi 0, %s103
      %s120 = sphi 0, %s104
      %s126 = sphi 0, %s128
      %s129 = sphi 0, %s126
      %s130 = sphi 0, %s129
      %s146 = sphi 0, %s130
      %s152 = sphi 0, %s154
      %s155 = sphi 0, %s152
      %s156 = sphi 0, %s155
      %s172 = sphi 0, %s156
      %s178 = sphi 0, %s180
      %s181 = sphi 0, %s178
      %s182 = sphi 0, %s181
      %s198 = sphi 0, %s182
      %s204 = sphi 0, %s206
      %s207 = sphi 0, %s204
      %s208 = sphi 0, %s207
      %s224 = sphi 0, %s208
      %s230 = sphi 0, %s232
      %s233 = sphi 0, %s230
      %s234 = sphi 0, %s233
      %s250 = sphi 0, %s234
      %s256 = sphi 0, %s258
      %s259 = sphi 0, %s256
      %s260 = sphi 0, %s259
      %s276 = sphi 0, %s260
      %s282 = sphi 0, %s284
      %s285 = sphi 0, %s282
      %s286 = sphi 0, %s285
      %s302 = sphi 0, %s286
      %s308 = sphi 0, %s310
      %s311 = sphi 0, %s308
      %s312 = sphi 0, %s311
      %s328 = sphi 0, %s312
      %s334 = sphi 0, %s336
      %s337 = sphi 0, %s334
      %s338 = sphi 0, %s337
      %s354 = sphi 0, %s338
      %s358 = sphi 0, %s358
      %s360 = sphi 0, %s358
      %s361 = sphi 0, %s360
      %s375 = sphi 0, %s361
    $region4: #{tpu_custom_call.1} parent=1 // loop_header_branch
      %25 = sbr.rel (%p23) target = $region8
    $region5: #{tpu_custom_call.1} parent=1 // loop_body
      %s27 = ssub.s32 %s22, 1
      %s28 = ssub.s32 %s22, 2
      %s29 = sadd.s32 %s22, 1
      %s31 = sadd.s32 %s30, 1
      %p34 = scmp.eq.s32.totalorder %s22, 1
      %p35 = scmp.ne.s32.totalorder %s30, %s32
      %p36 = scmp.eq.s32.totalorder %s22, 0
      %p37 = por %p35, %p36
      %p38 = scmp.ne.s32.totalorder %s30, %s32
      %p39 = scmp.eq.s32.totalorder %s27, 1
      %p40 = por %p38, %p39
      %p41 = scmp.ne.s32.totalorder %s32, %s33
      %p42 = scmp.eq.s32.totalorder %s27, 0
      %p43 = por %p41, %p42
      %p44 = scmp.ne.s32.totalorder %s32, %s33
      %p45 = scmp.eq.s32.totalorder %s28, 1
      %p46 = por %p44, %p45
      %p48 = scmp.ne.s32.totalorder %s33, %s47
      %p49 = scmp.eq.s32.totalorder %s28, 0
      %p50 = por %p48, %p49
      %s52 = sadd.s32 %s51, 1
      %p55 = scmp.eq.s32.totalorder %s22, 1
      %p56 = scmp.ne.s32.totalorder %s51, %s53
      %p57 = scmp.eq.s32.totalorder %s22, 0
      %p58 = por %p56, %p57
      %p59 = scmp.ne.s32.totalorder %s51, %s53
      %p60 = scmp.eq.s32.totalorder %s27, 1
      %p61 = por %p59, %p60
      %p62 = scmp.ne.s32.totalorder %s53, %s54
      %p63 = scmp.eq.s32.totalorder %s27, 0
      %p64 = por %p62, %p63
      %p65 = scmp.ne.s32.totalorder %s53, %s54
      %p66 = scmp.eq.s32.totalorder %s28, 1
      %p67 = por %p65, %p66
      %p69 = scmp.ne.s32.totalorder %s54, %s68
      %p70 = scmp.eq.s32.totalorder %s28, 0
      %p71 = por %p69, %p70
      %s72 = ssub.s32 %s22, %s29
      %p73 = scmp.eq.s32.totalorder %s72, 0
      %s75 = sadd.s32 %s74, 1
      %s76 = scalar_select %p73, %s74, %s75
      %p79 = pneg %p73
      %p80 = scmp.eq.s32.totalorder %s22, 1
      %p81 = por %p79, %p80
      %p82 = scmp.ne.s32.totalorder %s74, %s77
      %p83 = scmp.eq.s32.totalorder %s22, 0
      %p84 = por %p82, %p83
      %p85 = scmp.ne.s32.totalorder %s74, %s77
      %p86 = scmp.eq.s32.totalorder %s27, 1
      %p87 = por %p85, %p86
      %p88 = scmp.ne.s32.totalorder %s77, %s78
      %p89 = scmp.eq.s32.totalorder %s27, 0
      %p90 = por %p88, %p89
      %p91 = scmp.ne.s32.totalorder %s77, %s78
      %p92 = scmp.eq.s32.totalorder %s28, 1
      %p93 = por %p91, %p92
      %p95 = scmp.ne.s32.totalorder %s78, %s94
      %p96 = scmp.eq.s32.totalorder %s28, 0
      %p97 = por %p95, %p96
      %s98 = ssub.s32 %s22, %s29
      %p99 = scmp.eq.s32.totalorder %s98, 0
      %s101 = sadd.s32 %s100, 1
      %s102 = scalar_select %p99, %s100, %s101
      %p105 = pneg %p99
      %p106 = scmp.eq.s32.totalorder %s22, 1
      %p107 = por %p105, %p106
      %p108 = scmp.ne.s32.totalorder %s100, %s103
      %p109 = scmp.eq.s32.totalorder %s22, 0
      %p110 = por %p108, %p109
      %p111 = scmp.ne.s32.totalorder %s100, %s103
      %p112 = scmp.eq.s32.totalorder %s27, 1
      %p113 = por %p111, %p112
      %p114 = scmp.ne.s32.totalorder %s103, %s104
      %p115 = scmp.eq.s32.totalorder %s27, 0
      %p116 = por %p114, %p115
      %p117 = scmp.ne.s32.totalorder %s103, %s104
      %p118 = scmp.eq.s32.totalorder %s28, 1
      %p119 = por %p117, %p118
      %p121 = scmp.ne.s32.totalorder %s104, %s120
      %p122 = scmp.eq.s32.totalorder %s28, 0
      %p123 = por %p121, %p122
      %s124 = ssub.s32 %s22, %s29
      %p125 = scmp.eq.s32.totalorder %s124, 0
      %s127 = sadd.s32 %s126, 1
      %s128 = scalar_select %p125, %s126, %s127
      %p131 = pneg %p125
      %p132 = scmp.eq.s32.totalorder %s22, 1
      %p133 = por %p131, %p132
      %p134 = scmp.ne.s32.totalorder %s126, %s129
      %p135 = scmp.eq.s32.totalorder %s22, 0
      %p136 = por %p134, %p135
      %p137 = scmp.ne.s32.totalorder %s126, %s129
      %p138 = scmp.eq.s32.totalorder %s27, 1
      %p139 = por %p137, %p138
      %p140 = scmp.ne.s32.totalorder %s129, %s130
      %p141 = scmp.eq.s32.totalorder %s27, 0
      %p142 = por %p140, %p141
      %p143 = scmp.ne.s32.totalorder %s129, %s130
      %p144 = scmp.eq.s32.totalorder %s28, 1
      %p145 = por %p143, %p144
      %p147 = scmp.ne.s32.totalorder %s130, %s146
      %p148 = scmp.eq.s32.totalorder %s28, 0
      %p149 = por %p147, %p148
      %s150 = ssub.s32 %s22, %s29
      %p151 = scmp.eq.s32.totalorder %s150, 0
      %s153 = sadd.s32 %s152, 1
      %s154 = scalar_select %p151, %s152, %s153
      %p157 = pneg %p151
      %p158 = scmp.eq.s32.totalorder %s22, 1
      %p159 = por %p157, %p158
      %p160 = scmp.ne.s32.totalorder %s152, %s155
      %p161 = scmp.eq.s32.totalorder %s22, 0
      %p162 = por %p160, %p161
      %p163 = scmp.ne.s32.totalorder %s152, %s155
      %p164 = scmp.eq.s32.totalorder %s27, 1
      %p165 = por %p163, %p164
      %p166 = scmp.ne.s32.totalorder %s155, %s156
      %p167 = scmp.eq.s32.totalorder %s27, 0
      %p168 = por %p166, %p167
      %p169 = scmp.ne.s32.totalorder %s155, %s156
      %p170 = scmp.eq.s32.totalorder %s28, 1
      %p171 = por %p169, %p170
      %p173 = scmp.ne.s32.totalorder %s156, %s172
      %p174 = scmp.eq.s32.totalorder %s28, 0
      %p175 = por %p173, %p174
      %s176 = ssub.s32 %s22, %s29
      %p177 = scmp.eq.s32.totalorder %s176, 0
      %s179 = sadd.s32 %s178, 1
      %s180 = scalar_select %p177, %s178, %s179
      %p183 = pneg %p177
      %p184 = scmp.eq.s32.totalorder %s22, 1
      %p185 = por %p183, %p184
      %p186 = scmp.ne.s32.totalorder %s178, %s181
      %p187 = scmp.eq.s32.totalorder %s22, 0
      %p188 = por %p186, %p187
      %p189 = scmp.ne.s32.totalorder %s178, %s181
      %p190 = scmp.eq.s32.totalorder %s27, 1
      %p191 = por %p189, %p190
      %p192 = scmp.ne.s32.totalorder %s181, %s182
      %p193 = scmp.eq.s32.totalorder %s27, 0
      %p194 = por %p192, %p193
      %p195 = scmp.ne.s32.totalorder %s181, %s182
      %p196 = scmp.eq.s32.totalorder %s28, 1
      %p197 = por %p195, %p196
      %p199 = scmp.ne.s32.totalorder %s182, %s198
      %p200 = scmp.eq.s32.totalorder %s28, 0
      %p201 = por %p199, %p200
      %s202 = ssub.s32 %s22, %s29
      %p203 = scmp.eq.s32.totalorder %s202, 0
      %s205 = sadd.s32 %s204, 1
      %s206 = scalar_select %p203, %s204, %s205
      %p209 = pneg %p203
      %p210 = scmp.eq.s32.totalorder %s22, 1
      %p211 = por %p209, %p210
      %p212 = scmp.ne.s32.totalorder %s204, %s207
      %p213 = scmp.eq.s32.totalorder %s22, 0
      %p214 = por %p212, %p213
      %p215 = scmp.ne.s32.totalorder %s204, %s207
      %p216 = scmp.eq.s32.totalorder %s27, 1
      %p217 = por %p215, %p216
      %p218 = scmp.ne.s32.totalorder %s207, %s208
      %p219 = scmp.eq.s32.totalorder %s27, 0
      %p220 = por %p218, %p219
      %p221 = scmp.ne.s32.totalorder %s207, %s208
      %p222 = scmp.eq.s32.totalorder %s28, 1
      %p223 = por %p221, %p222
      %p225 = scmp.ne.s32.totalorder %s208, %s224
      %p226 = scmp.eq.s32.totalorder %s28, 0
      %p227 = por %p225, %p226
      %s228 = ssub.s32 %s22, %s29
      %p229 = scmp.eq.s32.totalorder %s228, 0
      %s231 = sadd.s32 %s230, 1
      %s232 = scalar_select %p229, %s230, %s231
      %p235 = pneg %p229
      %p236 = scmp.eq.s32.totalorder %s22, 1
      %p237 = por %p235, %p236
      %p238 = scmp.ne.s32.totalorder %s230, %s233
      %p239 = scmp.eq.s32.totalorder %s22, 0
      %p240 = por %p238, %p239
      %p241 = scmp.ne.s32.totalorder %s230, %s233
      %p242 = scmp.eq.s32.totalorder %s27, 1
      %p243 = por %p241, %p242
      %p244 = scmp.ne.s32.totalorder %s233, %s234
      %p245 = scmp.eq.s32.totalorder %s27, 0
      %p246 = por %p244, %p245
      %p247 = scmp.ne.s32.totalorder %s233, %s234
      %p248 = scmp.eq.s32.totalorder %s28, 1
      %p249 = por %p247, %p248
      %p251 = scmp.ne.s32.totalorder %s234, %s250
      %p252 = scmp.eq.s32.totalorder %s28, 0
      %p253 = por %p251, %p252
      %s254 = ssub.s32 %s22, %s29
      %p255 = scmp.eq.s32.totalorder %s254, 0
      %s257 = sadd.s32 %s256, 1
      %s258 = scalar_select %p255, %s256, %s257
      %p261 = pneg %p255
      %p262 = scmp.eq.s32.totalorder %s22, 1
      %p263 = por %p261, %p262
      %p264 = scmp.ne.s32.totalorder %s256, %s259
      %p265 = scmp.eq.s32.totalorder %s22, 0
      %p266 = por %p264, %p265
      %p267 = scmp.ne.s32.totalorder %s256, %s259
      %p268 = scmp.eq.s32.totalorder %s27, 1
      %p269 = por %p267, %p268
      %p270 = scmp.ne.s32.totalorder %s259, %s260
      %p271 = scmp.eq.s32.totalorder %s27, 0
      %p272 = por %p270, %p271
      %p273 = scmp.ne.s32.totalorder %s259, %s260
      %p274 = scmp.eq.s32.totalorder %s28, 1
      %p275 = por %p273, %p274
      %p277 = scmp.ne.s32.totalorder %s260, %s276
      %p278 = scmp.eq.s32.totalorder %s28, 0
      %p279 = por %p277, %p278
      %s280 = ssub.s32 %s22, %s29
      %p281 = scmp.eq.s32.totalorder %s280, 0
      %s283 = sadd.s32 %s282, 1
      %s284 = scalar_select %p281, %s282, %s283
      %p287 = pneg %p281
      %p288 = scmp.eq.s32.totalorder %s22, 1
      %p289 = por %p287, %p288
      %p290 = scmp.ne.s32.totalorder %s282, %s285
      %p291 = scmp.eq.s32.totalorder %s22, 0
      %p292 = por %p290, %p291
      %p293 = scmp.ne.s32.totalorder %s282, %s285
      %p294 = scmp.eq.s32.totalorder %s27, 1
      %p295 = por %p293, %p294
      %p296 = scmp.ne.s32.totalorder %s285, %s286
      %p297 = scmp.eq.s32.totalorder %s27, 0
      %p298 = por %p296, %p297
      %p299 = scmp.ne.s32.totalorder %s285, %s286
      %p300 = scmp.eq.s32.totalorder %s28, 1
      %p301 = por %p299, %p300
      %p303 = scmp.ne.s32.totalorder %s286, %s302
      %p304 = scmp.eq.s32.totalorder %s28, 0
      %p305 = por %p303, %p304
      %s306 = ssub.s32 %s22, %s29
      %p307 = scmp.eq.s32.totalorder %s306, 0
      %s309 = sadd.s32 %s308, 1
      %s310 = scalar_select %p307, %s308, %s309
      %p313 = pneg %p307
      %p314 = scmp.eq.s32.totalorder %s22, 1
      %p315 = por %p313, %p314
      %p316 = scmp.ne.s32.totalorder %s308, %s311
      %p317 = scmp.eq.s32.totalorder %s22, 0
      %p318 = por %p316, %p317
      %p319 = scmp.ne.s32.totalorder %s308, %s311
      %p320 = scmp.eq.s32.totalorder %s27, 1
      %p321 = por %p319, %p320
      %p322 = scmp.ne.s32.totalorder %s311, %s312
      %p323 = scmp.eq.s32.totalorder %s27, 0
      %p324 = por %p322, %p323
      %p325 = scmp.ne.s32.totalorder %s311, %s312
      %p326 = scmp.eq.s32.totalorder %s28, 1
      %p327 = por %p325, %p326
      %p329 = scmp.ne.s32.totalorder %s312, %s328
      %p330 = scmp.eq.s32.totalorder %s28, 0
      %p331 = por %p329, %p330
      %s332 = ssub.s32 %s22, %s29
      %p333 = scmp.eq.s32.totalorder %s332, 0
      %s335 = sadd.s32 %s334, 1
      %s336 = scalar_select %p333, %s334, %s335
      %p339 = pneg %p333
      %p340 = scmp.eq.s32.totalorder %s22, 1
      %p341 = por %p339, %p340
      %p342 = scmp.ne.s32.totalorder %s334, %s337
      %p343 = scmp.eq.s32.totalorder %s22, 0
      %p344 = por %p342, %p343
      %p345 = scmp.ne.s32.totalorder %s334, %s337
      %p346 = scmp.eq.s32.totalorder %s27, 1
      %p347 = por %p345, %p346
      %p348 = scmp.ne.s32.totalorder %s337, %s338
      %p349 = scmp.eq.s32.totalorder %s27, 0
      %p350 = por %p348, %p349
      %p351 = scmp.ne.s32.totalorder %s337, %s338
      %p352 = scmp.eq.s32.totalorder %s28, 1
      %p353 = por %p351, %p352
      %p355 = scmp.ne.s32.totalorder %s338, %s354
      %p356 = scmp.eq.s32.totalorder %s28, 0
      %p357 = por %p355, %p356
      %s359 = sadd.s32 %s358, 1
      %p362 = scmp.eq.s32.totalorder %s22, 1
      %p363 = scmp.ne.s32.totalorder %s358, %s360
      %p364 = scmp.eq.s32.totalorder %s22, 0
      %p365 = por %p363, %p364
      %p366 = scmp.ne.s32.totalorder %s358, %s360
      %p367 = scmp.eq.s32.totalorder %s27, 1
      %p368 = por %p366, %p367
      %p369 = scmp.ne.s32.totalorder %s360, %s361
      %p370 = scmp.eq.s32.totalorder %s27, 0
      %p371 = por %p369, %p370
      %p372 = scmp.ne.s32.totalorder %s360, %s361
      %p373 = scmp.eq.s32.totalorder %s28, 1
      %p374 = por %p372, %p373
      %p376 = scmp.ne.s32.totalorder %s361, %s375
      %p377 = scmp.eq.s32.totalorder %s28, 0
      %p378 = por %p376, %p377
      %p379 = scmp.le.s32.totalorder 1, %s22
      %p380 = scmp.lt.s32.totalorder %s22, 3
      %p381 = pnand %p379, %p380
      %p382 = pneg %p381
      // Predicated region
      $region9: #{tpu_custom_call.1} parent=5 // pred_check
        _
      $region10: #{tpu_custom_call.1} parent=5 // pred_check_branch
        %384 = sbr.rel (%p381) target = $region12
      $region11: #{tpu_custom_call.1} parent=5 // pred_region
        %s385 = ssub.s32 %s22, 1
        // Predicated region
        $region13: #{tpu_custom_call.1} parent=11 // pred_check
          %p386 = pneg %p43
        $region14: #{tpu_custom_call.1} parent=11 // pred_check_branch
          %388 = sbr.rel (%p386) target = $region16
        $region15: #{tpu_custom_call.1} parent=11 // pred_region
          %s390 = ssub.s32 256, 256
          %391 = vsyncadd [#allocation4], %s390
          %s392 = sshll.u32 [#allocation3], 4
          %s393 = int_to_ptr.vmem [resolvable:$true] %s392
          %398 = dma.hbm_to_vmem [thread:$0]  %s0, 256, %s393, [#allocation4], 128, 128, 8
        $region16: #{tpu_custom_call.1} parent=11 // pred_fallthru
          _
        // Predicated region
        $region17: #{tpu_custom_call.1} parent=11 // pred_check
          %p399 = pneg %p64
        $region18: #{tpu_custom_call.1} parent=11 // pred_check_branch
          %401 = sbr.rel (%p399) target = $region20
        $region19: #{tpu_custom_call.1} parent=11 // pred_region
          %s403 = ssub.s32 32, 32
          %404 = vsyncadd [#allocation7], %s403
          %s405 = sshll.u32 [#allocation6], 4
          %s406 = int_to_ptr.vmem [resolvable:$true] %s405
          %411 = dma.hbm_to_vmem [thread:$0]  %s1, 32, %s406, [#allocation7], 16, 16, 1
        $region20: #{tpu_custom_call.1} parent=11 // pred_fallthru
          _
      $region12: #{tpu_custom_call.1} parent=5 // pred_fallthru
        _
      %p412 = scmp.lt.s32.totalorder %s22, 2
      // Predicated region
      $region21: #{tpu_custom_call.1} parent=5 // pred_check
        %p413 = pneg %p412
      $region22: #{tpu_custom_call.1} parent=5 // pred_check_branch
        %415 = sbr.rel (%p413) target = $region24
      $region23: #{tpu_custom_call.1} parent=5 // pred_region
        // Predicated region
        $region25: #{tpu_custom_call.1} parent=23 // pred_check
          %p416 = pneg %p84
        $region26: #{tpu_custom_call.1} parent=23 // pred_check_branch
          %418 = sbr.rel (%p416) target = $region28
        $region27: #{tpu_custom_call.1} parent=23 // pred_region
          %p419 = scmp.lt.s32.totalorder %s22, 1
          %s420 = scalar_select %p419, %s22, 1
          %s421 = smul.addr %s420, 4
          %s422 = smul.addr %s421, 8
          %s423 = scalar_lea.vmem %s2, %s422
        $region28: #{tpu_custom_call.1} parent=23 // pred_fallthru
          _
        // Predicated region
        $region29: #{tpu_custom_call.1} parent=23 // pred_check
          %p424 = pneg %p110
        $region30: #{tpu_custom_call.1} parent=23 // pred_check_branch
          %426 = sbr.rel (%p424) target = $region32
        $region31: #{tpu_custom_call.1} parent=23 // pred_region
          %p427 = scmp.lt.s32.totalorder %s22, 1
          %s428 = scalar_select %p427, %s22, 1
          %s429 = smul.addr %s428, 4
          %s430 = smul.addr %s429, 8
          %s431 = scalar_lea.vmem %s3, %s430
        $region32: #{tpu_custom_call.1} parent=23 // pred_fallthru
          _
        // Predicated region
        $region33: #{tpu_custom_call.1} parent=23 // pred_check
          %p432 = pneg %p136
        $region34: #{tpu_custom_call.1} parent=23 // pred_check_branch
          %434 = sbr.rel (%p432) target = $region36
        $region35: #{tpu_custom_call.1} parent=23 // pred_region
          %p435 = scmp.lt.s32.totalorder %s22, 1
          %s436 = scalar_select %p435, %s22, 1
          %s437 = scalar_lea.vmem %s4, %s436
        $region36: #{tpu_custom_call.1} parent=23 // pred_fallthru
          _
        // Predicated region
        $region37: #{tpu_custom_call.1} parent=23 // pred_check
          %p438 = pneg %p162
        $region38: #{tpu_custom_call.1} parent=23 // pred_check_branch
          %440 = sbr.rel (%p438) target = $region40
        $region39: #{tpu_custom_call.1} parent=23 // pred_region
          %p441 = scmp.lt.s32.totalorder %s22, 1
          %s442 = scalar_select %p441, %s22, 1
          %s443 = scalar_lea.vmem %s5, %s442
        $region40: #{tpu_custom_call.1} parent=23 // pred_fallthru
          _
        // Predicated region
        $region41: #{tpu_custom_call.1} parent=23 // pred_check
          %p444 = pneg %p188
        $region42: #{tpu_custom_call.1} parent=23 // pred_check_branch
          %446 = sbr.rel (%p444) target = $region44
        $region43: #{tpu_custom_call.1} parent=23 // pred_region
          %p447 = scmp.lt.s32.totalorder %s22, 1
          %s448 = scalar_select %p447, %s22, 1
          %s449 = scalar_lea.vmem %s6, %s448
        $region44: #{tpu_custom_call.1} parent=23 // pred_fallthru
          _
        // Predicated region
        $region45: #{tpu_custom_call.1} parent=23 // pred_check
          %p450 = pneg %p214
        $region46: #{tpu_custom_call.1} parent=23 // pred_check_branch
          %452 = sbr.rel (%p450) target = $region48
        $region47: #{tpu_custom_call.1} parent=23 // pred_region
          %p453 = scmp.lt.s32.totalorder %s22, 1
          %s454 = scalar_select %p453, %s22, 1
          %s455 = smul.addr %s454, 4
          %s456 = smul.addr %s455, 8
          %s457 = scalar_lea.vmem %s7, %s456
        $region48: #{tpu_custom_call.1} parent=23 // pred_fallthru
          _
        // Predicated region
        $region49: #{tpu_custom_call.1} parent=23 // pred_check
          %p458 = pneg %p240
        $region50: #{tpu_custom_call.1} parent=23 // pred_check_branch
          %460 = sbr.rel (%p458) target = $region52
        $region51: #{tpu_custom_call.1} parent=23 // pred_region
          %p461 = scmp.lt.s32.totalorder %s22, 1
          %s462 = scalar_select %p461, %s22, 1
          %s463 = scalar_lea.vmem %s8, %s462
        $region52: #{tpu_custom_call.1} parent=23 // pred_fallthru
          _
        // Predicated region
        $region53: #{tpu_custom_call.1} parent=23 // pred_check
          %p464 = pneg %p266
        $region54: #{tpu_custom_call.1} parent=23 // pred_check_branch
          %466 = sbr.rel (%p464) target = $region56
        $region55: #{tpu_custom_call.1} parent=23 // pred_region
          %p467 = scmp.lt.s32.totalorder %s22, 1
          %s468 = scalar_select %p467, %s22, 1
          %s469 = smul.addr %s468, 8
          %s470 = smul.addr %s469, 8
          %s471 = scalar_lea.vmem %s9, %s470
        $region56: #{tpu_custom_call.1} parent=23 // pred_fallthru
          _
        // Predicated region
        $region57: #{tpu_custom_call.1} parent=23 // pred_check
          %p472 = pneg %p292
        $region58: #{tpu_custom_call.1} parent=23 // pred_check_branch
          %474 = sbr.rel (%p472) target = $region60
        $region59: #{tpu_custom_call.1} parent=23 // pred_region
          %p475 = scmp.lt.s32.totalorder %s22, 1
          %s476 = scalar_select %p475, %s22, 1
          %s477 = scalar_lea.vmem %s10, %s476
        $region60: #{tpu_custom_call.1} parent=23 // pred_fallthru
          _
        // Predicated region
        $region61: #{tpu_custom_call.1} parent=23 // pred_check
          %p478 = pneg %p318
        $region62: #{tpu_custom_call.1} parent=23 // pred_check_branch
          %480 = sbr.rel (%p478) target = $region64
        $region63: #{tpu_custom_call.1} parent=23 // pred_region
          %p481 = scmp.lt.s32.totalorder %s22, 1
          %s482 = scalar_select %p481, %s22, 1
          %s483 = scalar_lea.vmem %s11, %s482
        $region64: #{tpu_custom_call.1} parent=23 // pred_fallthru
          _
        // Predicated region
        $region65: #{tpu_custom_call.1} parent=23 // pred_check
          %p484 = pneg %p344
        $region66: #{tpu_custom_call.1} parent=23 // pred_check_branch
          %486 = sbr.rel (%p484) target = $region68
        $region67: #{tpu_custom_call.1} parent=23 // pred_region
          %p487 = scmp.lt.s32.totalorder %s22, 1
          %s488 = scalar_select %p487, %s22, 1
          %s489 = scalar_lea.vmem %s12, %s488
        $region68: #{tpu_custom_call.1} parent=23 // pred_fallthru
          _
      $region24: #{tpu_custom_call.1} parent=5 // pred_fallthru
        _
      %p490 = scmp.le.s32.totalorder 1, %s22
      %p491 = scmp.lt.s32.totalorder %s22, 3
      %p492 = pnand %p490, %p491
      %p493 = pneg %p492
      // Predicated region
      $region69: #{tpu_custom_call.1} parent=5 // pred_check
        _
      $region70: #{tpu_custom_call.1} parent=5 // pred_check_branch
        %495 = sbr.rel (%p492) target = $region72
      $region71: #{tpu_custom_call.1} parent=5 // pred_region
        %s496 = ssub.s32 %s22, 1
        // Predicated region
        $region73: #{tpu_custom_call.1} parent=71 // pred_check
          %p497 = pneg %p43
        $region74: #{tpu_custom_call.1} parent=71 // pred_check_branch
          %499 = sbr.rel (%p497) target = $region76
        $region75: #{tpu_custom_call.1} parent=71 // pred_region
          %500 = dma.done [#allocation4], 256
        $region76: #{tpu_custom_call.1} parent=71 // pred_fallthru
          _
        // Predicated region
        $region77: #{tpu_custom_call.1} parent=71 // pred_check
          %p501 = pneg %p64
        $region78: #{tpu_custom_call.1} parent=71 // pred_check_branch
          %503 = sbr.rel (%p501) target = $region80
        $region79: #{tpu_custom_call.1} parent=71 // pred_region
          %504 = dma.done [#allocation7], 32
        $region80: #{tpu_custom_call.1} parent=71 // pred_fallthru
          _
        %p505 = pneg %p43
        %p506 = pneg %p40
        %p507 = pneg %p64
        %p508 = pneg %p61
        %p509 = scmp.lt.s32.totalorder %s27, 1
        %s510 = scalar_select %p509, %s27, 1
        %s511 = smul.addr %s510, 4
        %s512 = smul.addr %s511, 8
        %s513 = scalar_lea.vmem %s2, %s512
        %p514 = pneg %p90
        %p515 = pneg %p87
        %p516 = scmp.lt.s32.totalorder %s27, 1
        %s517 = scalar_select %p516, %s27, 1
        %s518 = smul.addr %s517, 4
        %s519 = smul.addr %s518, 8
        %s520 = scalar_lea.vmem %s3, %s519
        %p521 = pneg %p116
        %p522 = pneg %p113
        %p523 = scmp.lt.s32.totalorder %s27, 1
        %s524 = scalar_select %p523, %s27, 1
        %s525 = scalar_lea.vmem %s4, %s524
        %p526 = pneg %p142
        %p527 = pneg %p139
        %p528 = scmp.lt.s32.totalorder %s27, 1
        %s529 = scalar_select %p528, %s27, 1
        %s530 = scalar_lea.vmem %s5, %s529
        %p531 = pneg %p168
        %p532 = pneg %p165
        %p533 = scmp.lt.s32.totalorder %s27, 1
        %s534 = scalar_select %p533, %s27, 1
        %s535 = scalar_lea.vmem %s6, %s534
        %p536 = pneg %p194
        %p537 = pneg %p191
        %p538 = scmp.lt.s32.totalorder %s27, 1
        %s539 = scalar_select %p538, %s27, 1
        %s540 = smul.addr %s539, 4
        %s541 = smul.addr %s540, 8
        %s542 = scalar_lea.vmem %s7, %s541
        %p543 = pneg %p220
        %p544 = pneg %p217
        %p545 = scmp.lt.s32.totalorder %s27, 1
        %s546 = scalar_select %p545, %s27, 1
        %s547 = scalar_lea.vmem %s8, %s546
        %p548 = pneg %p246
        %p549 = pneg %p243
        %p550 = scmp.lt.s32.totalorder %s27, 1
        %s551 = scalar_select %p550, %s27, 1
        %s552 = smul.addr %s551, 8
        %s553 = smul.addr %s552, 8
        %s554 = scalar_lea.vmem %s9, %s553
        %p555 = pneg %p272
        %p556 = pneg %p269
        %p557 = scmp.lt.s32.totalorder %s27, 1
        %s558 = scalar_select %p557, %s27, 1
        %s559 = scalar_lea.vmem %s10, %s558
        %p560 = pneg %p298
        %p561 = pneg %p295
        %p562 = scmp.lt.s32.totalorder %s27, 1
        %s563 = scalar_select %p562, %s27, 1
        %s564 = scalar_lea.vmem %s11, %s563
        %p565 = pneg %p324
        %p566 = pneg %p321
        %p567 = scmp.lt.s32.totalorder %s27, 1
        %s568 = scalar_select %p567, %s27, 1
        %s569 = scalar_lea.vmem %s12, %s568
        %p570 = pneg %p350
        %p571 = pneg %p347
        %p572 = pneg %p371
        %p573 = pneg %p368
        %p574 = scmp.lt.s32.totalorder %s27, 1
        %s575 = scalar_select %p574, %s27, 1
        %s576 = smul.addr %s575, 4
        %s577 = smul.addr %s576, 8
        %s578 = scalar_lea.vmem %s2, %s577
        %p579 = scmp.lt.s32.totalorder %s27, 1
        %s580 = scalar_select %p579, %s27, 1
        %s581 = smul.addr %s580, 4
        %s582 = smul.addr %s581, 8
        %s583 = scalar_lea.vmem %s3, %s582
        %p584 = scmp.lt.s32.totalorder %s27, 1
        %s585 = scalar_select %p584, %s27, 1
        %s586 = scalar_lea.vmem %s4, %s585
        %p587 = scmp.lt.s32.totalorder %s27, 1
        %s588 = scalar_select %p587, %s27, 1
        %s589 = scalar_lea.vmem %s5, %s588
        %p590 = scmp.lt.s32.totalorder %s27, 1
        %s591 = scalar_select %p590, %s27, 1
        %s592 = scalar_lea.vmem %s6, %s591
        %p593 = scmp.lt.s32.totalorder %s27, 1
        %s594 = scalar_select %p593, %s27, 1
        %s595 = smul.addr %s594, 4
        %s596 = smul.addr %s595, 8
        %s597 = scalar_lea.vmem %s7, %s596
        %p598 = scmp.lt.s32.totalorder %s27, 1
        %s599 = scalar_select %p598, %s27, 1
        %s600 = scalar_lea.vmem %s8, %s599
        %p601 = scmp.lt.s32.totalorder %s27, 1
        %s602 = scalar_select %p601, %s27, 1
        %s603 = smul.addr %s602, 8
        %s604 = smul.addr %s603, 8
        %s605 = scalar_lea.vmem %s9, %s604
        %p606 = scmp.lt.s32.totalorder %s27, 1
        %s607 = scalar_select %p606, %s27, 1
        %s608 = scalar_lea.vmem %s10, %s607
        %p609 = scmp.lt.s32.totalorder %s27, 1
        %s610 = scalar_select %p609, %s27, 1
        %s611 = scalar_lea.vmem %s11, %s610
        %p612 = scmp.lt.s32.totalorder %s27, 1
        %s613 = scalar_select %p612, %s27, 1
        %s614 = scalar_lea.vmem %s12, %s613
        %p615 = scmp.eq.s32.totalorder %s27, 0
        // Predicated region
        $region81: #{tpu_custom_call.1} parent=71 // pred_check
          %p616 = pneg %p615
        $region82: #{tpu_custom_call.1} parent=71 // pred_check_branch
          %618 = sbr.rel (%p616) target = $region84
        $region83: #{tpu_custom_call.1} parent=71 // pred_region
          %v619 = vld [vmem:[#allocation3] sm:$0xff]
          %v620 = vld [vmem:[#allocation3 + $0x8] sm:$0xff]
          %vm621 = vcmask 261120
          %622 = vst.msk [vmem:[#allocation2] sm:$0xff] %vm621, %v619
          %623 = vst.msk [vmem:[#allocation2 + $0x8] sm:$0xff] %vm621, %v620
        $region84: #{tpu_custom_call.1} parent=71 // pred_fallthru
          _
        %v624 = vld [vmem:[#allocation2] sm:$0xff]
        %v625 = vld [vmem:[#allocation2 + $0x8] sm:$0xff]
        %v626 = vld [vmem:[#allocation6] sm:$0x1]
        %v627 = vld [vmem:[#allocation6 + $0x1] sm:$0x1]
        %v628 = vld [vmem:[%s578] sm:$0xff]
        %v629 = vld [vmem:[%s578 + $0x8] sm:$0xff]
        %v630 = vld [vmem:[%s578 + $0x10] sm:$0xff]
        %v631 = vld [vmem:[%s578 + $0x18] sm:$0xff]
        %vm632 = vcmask 261120
        %v634 = vsel %vm632, %v624, 0
        %v637 = vsel %vm632, %v625, 0
        %639 = vmatprep.subr.mxu0 0.0
        %640 = vmatpush1.msra.mxu0 0.0
        %641 = vmatprep.subr.mxu0 0.0
        %642 = vmatpush1.msra.mxu0 0.0
        %643 = vmatprep.subr.mxu0 0.0
        %644 = vmatpush1.msra.mxu0 0.0
        %645 = vmatprep.subr.mxu0 0.0
        %646 = vmatpush1.msra.mxu0 0.0
        %647 = vmatprep.subr.mxu0 0.0
        %648 = vmatpush1.msra.mxu0 0.0
        %649 = vmatprep.subr.mxu0 0.0
        %650 = vmatpush1.msra.mxu0 0.0
        %651 = vmatprep.subr.mxu0 0.0
        %652 = vmatpush1.msra.mxu0 0.0
        %653 = vmatprep.subr.mxu0 0.0
        %654 = vmatpush1.msra.mxu0 0.0
        %655 = vmatprep.subr.mxu0 0.0
        %656 = vmatpush1.msra.mxu0 0.0
        %657 = vmatprep.subr.mxu0 0.0
        %658 = vmatpush1.msra.mxu0 0.0
        %659 = vmatprep.subr.mxu0 0.0
        %660 = vmatpush1.msra.mxu0 0.0
        %661 = vmatprep.subr.mxu0 0.0
        %662 = vmatpush1.msra.mxu0 0.0
        %663 = vmatprep.subr.mxu0 0.0
        %664 = vmatpush1.msra.mxu0 %v631
        %665 = vmatprep.subr.mxu0 0.0
        %666 = vmatpush1.msra.mxu0 %v630
        %667 = vmatprep.subr.mxu0 0.0
        %668 = vmatpush1.msra.mxu0 %v629
        %669 = vmatprep.subr.mxu0 0.0
        %670 = vmatpush1.msra.mxu0 %v628
        %671 = vmatprep.subr.mxu0 0.0
        %672 = vmatpush2.msra.mxu0 0.0
        %673 = vmatprep.subr.mxu0 0.0
        %674 = vmatpush2.msra.mxu0 0.0
        %675 = vmatprep.subr.mxu0 0.0
        %676 = vmatpush2.msra.mxu0 0.0
        %677 = vmatprep.subr.mxu0 0.0
        %678 = vmatpush2.msra.mxu0 0.0
        %679 = vmatprep.subr.mxu0 0.0
        %680 = vmatpush2.msra.mxu0 0.0
        %681 = vmatprep.subr.mxu0 0.0
        %682 = vmatpush2.msra.mxu0 0.0
        %683 = vmatprep.subr.mxu0 0.0
        %684 = vmatpush2.msra.mxu0 0.0
        %685 = vmatprep.subr.mxu0 0.0
        %686 = vmatpush2.msra.mxu0 0.0
        %687 = vmatprep.subr.mxu0 0.0
        %688 = vmatpush2.msra.mxu0 0.0
        %689 = vmatprep.subr.mxu0 0.0
        %690 = vmatpush2.msra.mxu0 0.0
        %691 = vmatprep.subr.mxu0 0.0
        %692 = vmatpush2.msra.mxu0 0.0
        %693 = vmatprep.subr.mxu0 0.0
        %694 = vmatpush2.msra.mxu0 0.0
        %695 = vmatprep.subr.mxu0 0.0
        %696 = vmatpush2.msra.mxu0 0.0
        %697 = vmatprep.subr.mxu0 0.0
        %698 = vmatpush2.msra.mxu0 0.0
        %699 = vmatprep.subr.mxu0 0.0
        %700 = vmatpush2.msra.mxu0 0.0
        %701 = vmatprep.subr.mxu0 0.0
        %702 = vmatpush2.msra.mxu0 0.0
        %703 = vmatprep.mubr.f32.mxu0 0.0
        %704 = vmatmul.mubr.f32.gmra.mxu0 %v634
        %v705 = vpop.f32.mrf.mxu0
        %v706 = vadd.f32 0.0, %v705
        %v707 = vpop.f32.mrf.mxu0
        %708 = vmatprep.mubr.f32.mxu0 0.0
        %709 = vmatmul.mubr.f32.gmra.mxu0 %v637
        %v710 = vpop.f32.mrf.mxu0
        %v711 = vadd.f32 0.0, %v710
        %v712 = vpop.f32.mrf.mxu0
        %713 = vdwg.mxu0
        %v716 = vlaneseq
        %v717 = vshrl.u32 %v716, 7
        %v718 = vsub.s32 0, %v717
        %v719 = vrot.slane %v626, %v718
        %v720 = vlaneseq
        %v721 = vshrl.u32 %v720, 7
        %v722 = vsub.s32 0, %v721
        %v723 = vrot.slane %v627, %v722
        %727 = vrot.lane.b32.xlu0 %v706, 96
        %v728 = vpop.permute.xlu0 %727
        %vm729 = vcmask 64512
        %v730 = vsel %vm729, %v706, 0
        %v732 = vsel %vm729, %v728, 0
        %734 = vmatprep.subr.mxu0 0.0
        %735 = vmatpush1.xpose.msra.mxu0 0.0
        %736 = vmatprep.subr.mxu0 0.0
        %737 = vmatpush1.xpose.msra.mxu0 0.0
        %738 = vmatprep.subr.mxu0 0.0
        %739 = vmatpush1.xpose.msra.mxu0 0.0
        %740 = vmatprep.subr.mxu0 0.0
        %741 = vmatpush1.xpose.msra.mxu0 0.0
        %742 = vmatprep.subr.mxu0 0.0
        %743 = vmatpush1.xpose.msra.mxu0 0.0
        %744 = vmatprep.subr.mxu0 0.0
        %745 = vmatpush1.xpose.msra.mxu0 0.0
        %746 = vmatprep.subr.mxu0 0.0
        %747 = vmatpush1.xpose.msra.mxu0 0.0
        %748 = vmatprep.subr.mxu0 0.0
        %749 = vmatpush1.xpose.msra.mxu0 0.0
        %750 = vmatprep.subr.mxu0 0.0
        %751 = vmatpush1.xpose.msra.mxu0 0.0
        %752 = vmatprep.subr.mxu0 0.0
        %753 = vmatpush1.xpose.msra.mxu0 0.0
        %754 = vmatprep.subr.mxu0 0.0
        %755 = vmatpush1.xpose.msra.mxu0 0.0
        %756 = vmatprep.subr.mxu0 0.0
        %757 = vmatpush1.xpose.msra.mxu0 0.0
        %758 = vmatprep.subr.mxu0 0.0
        %759 = vmatpush1.xpose.msra.mxu0 0.0
        %760 = vmatprep.subr.mxu0 0.0
        %761 = vmatpush1.xpose.msra.mxu0 0.0
        %762 = vmatprep.subr.mxu0 0.0
        %763 = vmatpush1.xpose.msra.mxu0 0.0
        %764 = vmatprep.subr.mxu0 0.0
        %765 = vmatpush1.xpose.msra.mxu0 %v732
        %766 = vmatprep.subr.mxu0 0.0
        %767 = vmatpush2.xpose.msra.mxu0 0.0
        %768 = vmatprep.subr.mxu0 0.0
        %769 = vmatpush2.xpose.msra.mxu0 0.0
        %770 = vmatprep.subr.mxu0 0.0
        %771 = vmatpush2.xpose.msra.mxu0 0.0
        %772 = vmatprep.subr.mxu0 0.0
        %773 = vmatpush2.xpose.msra.mxu0 0.0
        %774 = vmatprep.subr.mxu0 0.0
        %775 = vmatpush2.xpose.msra.mxu0 0.0
        %776 = vmatprep.subr.mxu0 0.0
        %777 = vmatpush2.xpose.msra.mxu0 0.0
        %778 = vmatprep.subr.mxu0 0.0
        %779 = vmatpush2.xpose.msra.mxu0 0.0
        %780 = vmatprep.subr.mxu0 0.0
        %781 = vmatpush2.xpose.msra.mxu0 0.0
        %782 = vmatprep.subr.mxu0 0.0
        %783 = vmatpush2.xpose.msra.mxu0 0.0
        %784 = vmatprep.subr.mxu0 0.0
        %785 = vmatpush2.xpose.msra.mxu0 0.0
        %786 = vmatprep.subr.mxu0 0.0
        %787 = vmatpush2.xpose.msra.mxu0 0.0
        %788 = vmatprep.subr.mxu0 0.0
        %789 = vmatpush2.xpose.msra.mxu0 0.0
        %790 = vmatprep.subr.mxu0 0.0
        %791 = vmatpush2.xpose.msra.mxu0 0.0
        %792 = vmatprep.subr.mxu0 0.0
        %793 = vmatpush2.xpose.msra.mxu0 0.0
        %794 = vmatprep.subr.mxu0 0.0
        %795 = vmatpush2.xpose.msra.mxu0 0.0
        %796 = vmatprep.subr.mxu0 0.0
        %797 = vmatpush2.xpose.msra.mxu0 0.0
        %798 = vmatprep.mubr.f32.mxu0 0.0
        %799 = vmatmul.mubr.f32.gmra.mxu0 %v730
        %v800 = vpop.f32.mrf.mxu0
        %v801 = vadd.f32 %v719, %v800
        %v802 = vpop.f32.mrf.mxu0
        %803 = vdwg.mxu0
        %805 = vrot.lane.b32.xlu0 %v711, 96
        %v806 = vpop.permute.xlu0 %805
        %v807 = vsel %vm729, %v711, 0
        %v809 = vsel %vm729, %v806, 0
        %811 = vmatprep.subr.mxu0 0.0
        %812 = vmatpush1.xpose.msra.mxu0 0.0
        %813 = vmatprep.subr.mxu0 0.0
        %814 = vmatpush1.xpose.msra.mxu0 0.0
        %815 = vmatprep.subr.mxu0 0.0
        %816 = vmatpush1.xpose.msra.mxu0 0.0
        %817 = vmatprep.subr.mxu0 0.0
        %818 = vmatpush1.xpose.msra.mxu0 0.0
        %819 = vmatprep.subr.mxu0 0.0
        %820 = vmatpush1.xpose.msra.mxu0 0.0
        %821 = vmatprep.subr.mxu0 0.0
        %822 = vmatpush1.xpose.msra.mxu0 0.0
        %823 = vmatprep.subr.mxu0 0.0
        %824 = vmatpush1.xpose.msra.mxu0 0.0
        %825 = vmatprep.subr.mxu0 0.0
        %826 = vmatpush1.xpose.msra.mxu0 0.0
        %827 = vmatprep.subr.mxu0 0.0
        %828 = vmatpush1.xpose.msra.mxu0 0.0
        %829 = vmatprep.subr.mxu0 0.0
        %830 = vmatpush1.xpose.msra.mxu0 0.0
        %831 = vmatprep.subr.mxu0 0.0
        %832 = vmatpush1.xpose.msra.mxu0 0.0
        %833 = vmatprep.subr.mxu0 0.0
        %834 = vmatpush1.xpose.msra.mxu0 0.0
        %835 = vmatprep.subr.mxu0 0.0
        %836 = vmatpush1.xpose.msra.mxu0 0.0
        %837 = vmatprep.subr.mxu0 0.0
        %838 = vmatpush1.xpose.msra.mxu0 0.0
        %839 = vmatprep.subr.mxu0 0.0
        %840 = vmatpush1.xpose.msra.mxu0 0.0
        %841 = vmatprep.subr.mxu0 0.0
        %842 = vmatpush1.xpose.msra.mxu0 %v809
        %843 = vmatprep.subr.mxu0 0.0
        %844 = vmatpush2.xpose.msra.mxu0 0.0
        %845 = vmatprep.subr.mxu0 0.0
        %846 = vmatpush2.xpose.msra.mxu0 0.0
        %847 = vmatprep.subr.mxu0 0.0
        %848 = vmatpush2.xpose.msra.mxu0 0.0
        %849 = vmatprep.subr.mxu0 0.0
        %850 = vmatpush2.xpose.msra.mxu0 0.0
        %851 = vmatprep.subr.mxu0 0.0
        %852 = vmatpush2.xpose.msra.mxu0 0.0
        %853 = vmatprep.subr.mxu0 0.0
        %854 = vmatpush2.xpose.msra.mxu0 0.0
        %855 = vmatprep.subr.mxu0 0.0
        %856 = vmatpush2.xpose.msra.mxu0 0.0
        %857 = vmatprep.subr.mxu0 0.0
        %858 = vmatpush2.xpose.msra.mxu0 0.0
        %859 = vmatprep.subr.mxu0 0.0
        %860 = vmatpush2.xpose.msra.mxu0 0.0
        %861 = vmatprep.subr.mxu0 0.0
        %862 = vmatpush2.xpose.msra.mxu0 0.0
        %863 = vmatprep.subr.mxu0 0.0
        %864 = vmatpush2.xpose.msra.mxu0 0.0
        %865 = vmatprep.subr.mxu0 0.0
        %866 = vmatpush2.xpose.msra.mxu0 0.0
        %867 = vmatprep.subr.mxu0 0.0
        %868 = vmatpush2.xpose.msra.mxu0 0.0
        %869 = vmatprep.subr.mxu0 0.0
        %870 = vmatpush2.xpose.msra.mxu0 0.0
        %871 = vmatprep.subr.mxu0 0.0
        %872 = vmatpush2.xpose.msra.mxu0 0.0
        %873 = vmatprep.subr.mxu0 0.0
        %874 = vmatpush2.xpose.msra.mxu0 0.0
        %875 = vmatprep.mubr.f32.mxu0 0.0
        %876 = vmatmul.mubr.f32.gmra.mxu0 %v807
        %v877 = vpop.f32.mrf.mxu0
        %v878 = vadd.f32 %v723, %v877
        %v879 = vpop.f32.mrf.mxu0
        %880 = vdwg.mxu0
        %v881 = vsel %vm729, %v801, -inf
        %882 = vmax.xlane.f32.xlu0 %v881
        %v883 = vpop.xlane.xlu0 %882
        %v884 = vsel %vm729, %v878, -inf
        %885 = vmax.xlane.f32.xlu0 %v884
        %v886 = vpop.xlane.xlu0 %885
        %v887 = vsub.f32 %v801, %v883
        %v888 = vsub.f32 %v878, %v886
        %v889 = vmul.f32 %v887, 1.442695
        %v890 = vpow.pop %v889
        %v891 = vmul.f32 %v888, 1.442695
        %v892 = vpow.pop %v891
        %v893 = vsel %vm729, %v890, 0.0
        %894 = vadd.xlane.f32.xlu0 %v893
        %v895 = vpop.xlane.xlu0 %894
        %v896 = vsel %vm729, %v892, 0.0
        %897 = vadd.xlane.f32.xlu0 %v896
        %v898 = vpop.xlane.xlu0 %897
        %899 = vrot.lane.b32.xlu0 %v706, 64
        %v900 = vpop.permute.xlu0 %899
        %v903 = vsel %vm729, %v890, 0
        %905 = vmatprep.subr.mxu0 0.0
        %906 = vmatpush1.msra.mxu0 0.0
        %907 = vmatprep.subr.mxu0 0.0
        %908 = vmatpush1.msra.mxu0 0.0
        %909 = vmatprep.subr.mxu0 0.0
        %910 = vmatpush1.msra.mxu0 0.0
        %911 = vmatprep.subr.mxu0 0.0
        %912 = vmatpush1.msra.mxu0 0.0
        %913 = vmatprep.subr.mxu0 0.0
        %914 = vmatpush1.msra.mxu0 0.0
        %915 = vmatprep.subr.mxu0 0.0
        %916 = vmatpush1.msra.mxu0 0.0
        %917 = vmatprep.subr.mxu0 0.0
        %918 = vmatpush1.msra.mxu0 0.0
        %919 = vmatprep.subr.mxu0 0.0
        %920 = vmatpush1.msra.mxu0 0.0
        %921 = vmatprep.subr.mxu0 0.0
        %922 = vmatpush1.msra.mxu0 0.0
        %923 = vmatprep.subr.mxu0 0.0
        %924 = vmatpush1.msra.mxu0 0.0
        %925 = vmatprep.subr.mxu0 0.0
        %926 = vmatpush1.msra.mxu0 0.0
        %927 = vmatprep.subr.mxu0 0.0
        %928 = vmatpush1.msra.mxu0 0.0
        %929 = vmatprep.subr.mxu0 0.0
        %930 = vmatpush1.msra.mxu0 0.0
        %931 = vmatprep.subr.mxu0 0.0
        %932 = vmatpush1.msra.mxu0 0.0
        %933 = vmatprep.subr.mxu0 0.0
        %934 = vmatpush1.msra.mxu0 0.0
        %935 = vmatprep.subr.mxu0 0.0
        %936 = vmatpush1.msra.mxu0 %v900
        %937 = vmatprep.subr.mxu0 0.0
        %938 = vmatpush2.msra.mxu0 0.0
        %939 = vmatprep.subr.mxu0 0.0
        %940 = vmatpush2.msra.mxu0 0.0
        %941 = vmatprep.subr.mxu0 0.0
        %942 = vmatpush2.msra.mxu0 0.0
        %943 = vmatprep.subr.mxu0 0.0
        %944 = vmatpush2.msra.mxu0 0.0
        %945 = vmatprep.subr.mxu0 0.0
        %946 = vmatpush2.msra.mxu0 0.0
        %947 = vmatprep.subr.mxu0 0.0
        %948 = vmatpush2.msra.mxu0 0.0
        %949 = vmatprep.subr.mxu0 0.0
        %950 = vmatpush2.msra.mxu0 0.0
        %951 = vmatprep.subr.mxu0 0.0
        %952 = vmatpush2.msra.mxu0 0.0
        %953 = vmatprep.subr.mxu0 0.0
        %954 = vmatpush2.msra.mxu0 0.0
        %955 = vmatprep.subr.mxu0 0.0
        %956 = vmatpush2.msra.mxu0 0.0
        %957 = vmatprep.subr.mxu0 0.0
        %958 = vmatpush2.msra.mxu0 0.0
        %959 = vmatprep.subr.mxu0 0.0
        %960 = vmatpush2.msra.mxu0 0.0
        %961 = vmatprep.subr.mxu0 0.0
        %962 = vmatpush2.msra.mxu0 0.0
        %963 = vmatprep.subr.mxu0 0.0
        %964 = vmatpush2.msra.mxu0 0.0
        %965 = vmatprep.subr.mxu0 0.0
        %966 = vmatpush2.msra.mxu0 0.0
        %967 = vmatprep.subr.mxu0 0.0
        %968 = vmatpush2.msra.mxu0 0.0
        %969 = vmatprep.mubr.f32.mxu0 0.0
        %970 = vmatmul.mubr.f32.gmra.mxu0 %v903
        %v971 = vpop.f32.mrf.mxu0
        %v972 = vadd.f32 0.0, %v971
        %v973 = vpop.f32.mrf.mxu0
        %974 = vdwg.mxu0
        %975 = vrot.lane.b32.xlu0 %v711, 64
        %v976 = vpop.permute.xlu0 %975
        %v979 = vsel %vm729, %v892, 0
        %981 = vmatprep.subr.mxu0 0.0
        %982 = vmatpush1.msra.mxu0 0.0
        %983 = vmatprep.subr.mxu0 0.0
        %984 = vmatpush1.msra.mxu0 0.0
        %985 = vmatprep.subr.mxu0 0.0
        %986 = vmatpush1.msra.mxu0 0.0
        %987 = vmatprep.subr.mxu0 0.0
        %988 = vmatpush1.msra.mxu0 0.0
        %989 = vmatprep.subr.mxu0 0.0
        %990 = vmatpush1.msra.mxu0 0.0
        %991 = vmatprep.subr.mxu0 0.0
        %992 = vmatpush1.msra.mxu0 0.0
        %993 = vmatprep.subr.mxu0 0.0
        %994 = vmatpush1.msra.mxu0 0.0
        %995 = vmatprep.subr.mxu0 0.0
        %996 = vmatpush1.msra.mxu0 0.0
        %997 = vmatprep.subr.mxu0 0.0
        %998 = vmatpush1.msra.mxu0 0.0
        %999 = vmatprep.subr.mxu0 0.0
        %1000 = vmatpush1.msra.mxu0 0.0
        %1001 = vmatprep.subr.mxu0 0.0
        %1002 = vmatpush1.msra.mxu0 0.0
        %1003 = vmatprep.subr.mxu0 0.0
        %1004 = vmatpush1.msra.mxu0 0.0
        %1005 = vmatprep.subr.mxu0 0.0
        %1006 = vmatpush1.msra.mxu0 0.0
        %1007 = vmatprep.subr.mxu0 0.0
        %1008 = vmatpush1.msra.mxu0 0.0
        %1009 = vmatprep.subr.mxu0 0.0
        %1010 = vmatpush1.msra.mxu0 0.0
        %1011 = vmatprep.subr.mxu0 0.0
        %1012 = vmatpush1.msra.mxu0 %v976
        %1013 = vmatprep.subr.mxu0 0.0
        %1014 = vmatpush2.msra.mxu0 0.0
        %1015 = vmatprep.subr.mxu0 0.0
        %1016 = vmatpush2.msra.mxu0 0.0
        %1017 = vmatprep.subr.mxu0 0.0
        %1018 = vmatpush2.msra.mxu0 0.0
        %1019 = vmatprep.subr.mxu0 0.0
        %1020 = vmatpush2.msra.mxu0 0.0
        %1021 = vmatprep.subr.mxu0 0.0
        %1022 = vmatpush2.msra.mxu0 0.0
        %1023 = vmatprep.subr.mxu0 0.0
        %1024 = vmatpush2.msra.mxu0 0.0
        %1025 = vmatprep.subr.mxu0 0.0
        %1026 = vmatpush2.msra.mxu0 0.0
        %1027 = vmatprep.subr.mxu0 0.0
        %1028 = vmatpush2.msra.mxu0 0.0
        %1029 = vmatprep.subr.mxu0 0.0
        %1030 = vmatpush2.msra.mxu0 0.0
        %1031 = vmatprep.subr.mxu0 0.0
        %1032 = vmatpush2.msra.mxu0 0.0
        %1033 = vmatprep.subr.mxu0 0.0
        %1034 = vmatpush2.msra.mxu0 0.0
        %1035 = vmatprep.subr.mxu0 0.0
        %1036 = vmatpush2.msra.mxu0 0.0
        %1037 = vmatprep.subr.mxu0 0.0
        %1038 = vmatpush2.msra.mxu0 0.0
        %1039 = vmatprep.subr.mxu0 0.0
        %1040 = vmatpush2.msra.mxu0 0.0
        %1041 = vmatprep.subr.mxu0 0.0
        %1042 = vmatpush2.msra.mxu0 0.0
        %1043 = vmatprep.subr.mxu0 0.0
        %1044 = vmatpush2.msra.mxu0 0.0
        %1045 = vmatprep.mubr.f32.mxu0 0.0
        %1046 = vmatmul.mubr.f32.gmra.mxu0 %v979
        %v1047 = vpop.f32.mrf.mxu0
        %v1048 = vadd.f32 0.0, %v1047
        %v1049 = vpop.f32.mrf.mxu0
        %1050 = vdwg.mxu0
        %v1051 = vrcp.pop %v895
        %v1052 = vrcp.pop %v898
        %v1053 = vmul.f32 %v972, %v1051
        %v1054 = vmul.f32 %v1048, %v1052
        %1055 = vrot.lane.b32.xlu0 %v706, 120
        %v1056 = vpop.permute.xlu0 %1055
        %1057 = vrot.lane.b32.xlu0 %v706, 88
        %v1058 = vpop.permute.xlu0 %1057
        %v1059 = vsel %vm729, %v1056, 0
        %v1061 = vsel %vm729, %v1058, 0
        %1063 = vmatprep.subr.mxu0 0.0
        %1064 = vmatpush1.xpose.msra.mxu0 0.0
        %1065 = vmatprep.subr.mxu0 0.0
        %1066 = vmatpush1.xpose.msra.mxu0 0.0
        %1067 = vmatprep.subr.mxu0 0.0
        %1068 = vmatpush1.xpose.msra.mxu0 0.0
        %1069 = vmatprep.subr.mxu0 0.0
        %1070 = vmatpush1.xpose.msra.mxu0 0.0
        %1071 = vmatprep.subr.mxu0 0.0
        %1072 = vmatpush1.xpose.msra.mxu0 0.0
        %1073 = vmatprep.subr.mxu0 0.0
        %1074 = vmatpush1.xpose.msra.mxu0 0.0
        %1075 = vmatprep.subr.mxu0 0.0
        %1076 = vmatpush1.xpose.msra.mxu0 0.0
        %1077 = vmatprep.subr.mxu0 0.0
        %1078 = vmatpush1.xpose.msra.mxu0 0.0
        %1079 = vmatprep.subr.mxu0 0.0
        %1080 = vmatpush1.xpose.msra.mxu0 0.0
        %1081 = vmatprep.subr.mxu0 0.0
        %1082 = vmatpush1.xpose.msra.mxu0 0.0
        %1083 = vmatprep.subr.mxu0 0.0
        %1084 = vmatpush1.xpose.msra.mxu0 0.0
        %1085 = vmatprep.subr.mxu0 0.0
        %1086 = vmatpush1.xpose.msra.mxu0 0.0
        %1087 = vmatprep.subr.mxu0 0.0
        %1088 = vmatpush1.xpose.msra.mxu0 0.0
        %1089 = vmatprep.subr.mxu0 0.0
        %1090 = vmatpush1.xpose.msra.mxu0 0.0
        %1091 = vmatprep.subr.mxu0 0.0
        %1092 = vmatpush1.xpose.msra.mxu0 0.0
        %1093 = vmatprep.subr.mxu0 0.0
        %1094 = vmatpush1.xpose.msra.mxu0 %v1061
        %1095 = vmatprep.subr.mxu0 0.0
        %1096 = vmatpush2.xpose.msra.mxu0 0.0
        %1097 = vmatprep.subr.mxu0 0.0
        %1098 = vmatpush2.xpose.msra.mxu0 0.0
        %1099 = vmatprep.subr.mxu0 0.0
        %1100 = vmatpush2.xpose.msra.mxu0 0.0
        %1101 = vmatprep.subr.mxu0 0.0
        %1102 = vmatpush2.xpose.msra.mxu0 0.0
        %1103 = vmatprep.subr.mxu0 0.0
        %1104 = vmatpush2.xpose.msra.mxu0 0.0
        %1105 = vmatprep.subr.mxu0 0.0
        %1106 = vmatpush2.xpose.msra.mxu0 0.0
        %1107 = vmatprep.subr.mxu0 0.0
        %1108 = vmatpush2.xpose.msra.mxu0 0.0
        %1109 = vmatprep.subr.mxu0 0.0
        %1110 = vmatpush2.xpose.msra.mxu0 0.0
        %1111 = vmatprep.subr.mxu0 0.0
        %1112 = vmatpush2.xpose.msra.mxu0 0.0
        %1113 = vmatprep.subr.mxu0 0.0
        %1114 = vmatpush2.xpose.msra.mxu0 0.0
        %1115 = vmatprep.subr.mxu0 0.0
        %1116 = vmatpush2.xpose.msra.mxu0 0.0
        %1117 = vmatprep.subr.mxu0 0.0
        %1118 = vmatpush2.xpose.msra.mxu0 0.0
        %1119 = vmatprep.subr.mxu0 0.0
        %1120 = vmatpush2.xpose.msra.mxu0 0.0
        %1121 = vmatprep.subr.mxu0 0.0
        %1122 = vmatpush2.xpose.msra.mxu0 0.0
        %1123 = vmatprep.subr.mxu0 0.0
        %1124 = vmatpush2.xpose.msra.mxu0 0.0
        %1125 = vmatprep.subr.mxu0 0.0
        %1126 = vmatpush2.xpose.msra.mxu0 0.0
        %1127 = vmatprep.mubr.f32.mxu0 0.0
        %1128 = vmatmul.mubr.f32.gmra.mxu0 %v1059
        %v1129 = vpop.f32.mrf.mxu0
        %v1130 = vadd.f32 %v719, %v1129
        %v1131 = vpop.f32.mrf.mxu0
        %1132 = vdwg.mxu0
        %1133 = vrot.lane.b32.xlu0 %v711, 120
        %v1134 = vpop.permute.xlu0 %1133
        %1135 = vrot.lane.b32.xlu0 %v711, 88
        %v1136 = vpop.permute.xlu0 %1135
        %v1137 = vsel %vm729, %v1134, 0
        %v1139 = vsel %vm729, %v1136, 0
        %1141 = vmatprep.subr.mxu0 0.0
        %1142 = vmatpush1.xpose.msra.mxu0 0.0
        %1143 = vmatprep.subr.mxu0 0.0
        %1144 = vmatpush1.xpose.msra.mxu0 0.0
        %1145 = vmatprep.subr.mxu0 0.0
        %1146 = vmatpush1.xpose.msra.mxu0 0.0
        %1147 = vmatprep.subr.mxu0 0.0
        %1148 = vmatpush1.xpose.msra.mxu0 0.0
        %1149 = vmatprep.subr.mxu0 0.0
        %1150 = vmatpush1.xpose.msra.mxu0 0.0
        %1151 = vmatprep.subr.mxu0 0.0
        %1152 = vmatpush1.xpose.msra.mxu0 0.0
        %1153 = vmatprep.subr.mxu0 0.0
        %1154 = vmatpush1.xpose.msra.mxu0 0.0
        %1155 = vmatprep.subr.mxu0 0.0
        %1156 = vmatpush1.xpose.msra.mxu0 0.0
        %1157 = vmatprep.subr.mxu0 0.0
        %1158 = vmatpush1.xpose.msra.mxu0 0.0
        %1159 = vmatprep.subr.mxu0 0.0
        %1160 = vmatpush1.xpose.msra.mxu0 0.0
        %1161 = vmatprep.subr.mxu0 0.0
        %1162 = vmatpush1.xpose.msra.mxu0 0.0
        %1163 = vmatprep.subr.mxu0 0.0
        %1164 = vmatpush1.xpose.msra.mxu0 0.0
        %1165 = vmatprep.subr.mxu0 0.0
        %1166 = vmatpush1.xpose.msra.mxu0 0.0
        %1167 = vmatprep.subr.mxu0 0.0
        %1168 = vmatpush1.xpose.msra.mxu0 0.0
        %1169 = vmatprep.subr.mxu0 0.0
        %1170 = vmatpush1.xpose.msra.mxu0 0.0
        %1171 = vmatprep.subr.mxu0 0.0
        %1172 = vmatpush1.xpose.msra.mxu0 %v1139
        %1173 = vmatprep.subr.mxu0 0.0
        %1174 = vmatpush2.xpose.msra.mxu0 0.0
        %1175 = vmatprep.subr.mxu0 0.0
        %1176 = vmatpush2.xpose.msra.mxu0 0.0
        %1177 = vmatprep.subr.mxu0 0.0
        %1178 = vmatpush2.xpose.msra.mxu0 0.0
        %1179 = vmatprep.subr.mxu0 0.0
        %1180 = vmatpush2.xpose.msra.mxu0 0.0
        %1181 = vmatprep.subr.mxu0 0.0
        %1182 = vmatpush2.xpose.msra.mxu0 0.0
        %1183 = vmatprep.subr.mxu0 0.0
        %1184 = vmatpush2.xpose.msra.mxu0 0.0
        %1185 = vmatprep.subr.mxu0 0.0
        %1186 = vmatpush2.xpose.msra.mxu0 0.0
        %1187 = vmatprep.subr.mxu0 0.0
        %1188 = vmatpush2.xpose.msra.mxu0 0.0
        %1189 = vmatprep.subr.mxu0 0.0
        %1190 = vmatpush2.xpose.msra.mxu0 0.0
        %1191 = vmatprep.subr.mxu0 0.0
        %1192 = vmatpush2.xpose.msra.mxu0 0.0
        %1193 = vmatprep.subr.mxu0 0.0
        %1194 = vmatpush2.xpose.msra.mxu0 0.0
        %1195 = vmatprep.subr.mxu0 0.0
        %1196 = vmatpush2.xpose.msra.mxu0 0.0
        %1197 = vmatprep.subr.mxu0 0.0
        %1198 = vmatpush2.xpose.msra.mxu0 0.0
        %1199 = vmatprep.subr.mxu0 0.0
        %1200 = vmatpush2.xpose.msra.mxu0 0.0
        %1201 = vmatprep.subr.mxu0 0.0
        %1202 = vmatpush2.xpose.msra.mxu0 0.0
        %1203 = vmatprep.subr.mxu0 0.0
        %1204 = vmatpush2.xpose.msra.mxu0 0.0
        %1205 = vmatprep.mubr.f32.mxu0 0.0
        %1206 = vmatmul.mubr.f32.gmra.mxu0 %v1137
        %v1207 = vpop.f32.mrf.mxu0
        %v1208 = vadd.f32 %v723, %v1207
        %v1209 = vpop.f32.mrf.mxu0
        %1210 = vdwg.mxu0
        %v1211 = vsel %vm729, %v1130, -inf
        %1212 = vmax.xlane.f32.xlu0 %v1211
        %v1213 = vpop.xlane.xlu0 %1212
        %v1214 = vsel %vm729, %v1208, -inf
        %1215 = vmax.xlane.f32.xlu0 %v1214
        %v1216 = vpop.xlane.xlu0 %1215
        %v1217 = vsub.f32 %v1130, %v1213
        %v1218 = vsub.f32 %v1208, %v1216
        %v1219 = vmul.f32 %v1217, 1.442695
        %v1220 = vpow.pop %v1219
        %v1221 = vmul.f32 %v1218, 1.442695
        %v1222 = vpow.pop %v1221
        %v1223 = vsel %vm729, %v1220, 0.0
        %1224 = vadd.xlane.f32.xlu0 %v1223
        %v1225 = vpop.xlane.xlu0 %1224
        %v1226 = vsel %vm729, %v1222, 0.0
        %1227 = vadd.xlane.f32.xlu0 %v1226
        %v1228 = vpop.xlane.xlu0 %1227
        %1229 = vrot.lane.b32.xlu0 %v706, 56
        %v1230 = vpop.permute.xlu0 %1229
        %v1233 = vsel %vm729, %v1220, 0
        %1235 = vmatprep.subr.mxu0 0.0
        %1236 = vmatpush1.msra.mxu0 0.0
        %1237 = vmatprep.subr.mxu0 0.0
        %1238 = vmatpush1.msra.mxu0 0.0
        %1239 = vmatprep.subr.mxu0 0.0
        %1240 = vmatpush1.msra.mxu0 0.0
        %1241 = vmatprep.subr.mxu0 0.0
        %1242 = vmatpush1.msra.mxu0 0.0
        %1243 = vmatprep.subr.mxu0 0.0
        %1244 = vmatpush1.msra.mxu0 0.0
        %1245 = vmatprep.subr.mxu0 0.0
        %1246 = vmatpush1.msra.mxu0 0.0
        %1247 = vmatprep.subr.mxu0 0.0
        %1248 = vmatpush1.msra.mxu0 0.0
        %1249 = vmatprep.subr.mxu0 0.0
        %1250 = vmatpush1.msra.mxu0 0.0
        %1251 = vmatprep.subr.mxu0 0.0
        %1252 = vmatpush1.msra.mxu0 0.0
        %1253 = vmatprep.subr.mxu0 0.0
        %1254 = vmatpush1.msra.mxu0 0.0
        %1255 = vmatprep.subr.mxu0 0.0
        %1256 = vmatpush1.msra.mxu0 0.0
        %1257 = vmatprep.subr.mxu0 0.0
        %1258 = vmatpush1.msra.mxu0 0.0
        %1259 = vmatprep.subr.mxu0 0.0
        %1260 = vmatpush1.msra.mxu0 0.0
        %1261 = vmatprep.subr.mxu0 0.0
        %1262 = vmatpush1.msra.mxu0 0.0
        %1263 = vmatprep.subr.mxu0 0.0
        %1264 = vmatpush1.msra.mxu0 0.0
        %1265 = vmatprep.subr.mxu0 0.0
        %1266 = vmatpush1.msra.mxu0 %v1230
        %1267 = vmatprep.subr.mxu0 0.0
        %1268 = vmatpush2.msra.mxu0 0.0
        %1269 = vmatprep.subr.mxu0 0.0
        %1270 = vmatpush2.msra.mxu0 0.0
        %1271 = vmatprep.subr.mxu0 0.0
        %1272 = vmatpush2.msra.mxu0 0.0
        %1273 = vmatprep.subr.mxu0 0.0
        %1274 = vmatpush2.msra.mxu0 0.0
        %1275 = vmatprep.subr.mxu0 0.0
        %1276 = vmatpush2.msra.mxu0 0.0
        %1277 = vmatprep.subr.mxu0 0.0
        %1278 = vmatpush2.msra.mxu0 0.0
        %1279 = vmatprep.subr.mxu0 0.0
        %1280 = vmatpush2.msra.mxu0 0.0
        %1281 = vmatprep.subr.mxu0 0.0
        %1282 = vmatpush2.msra.mxu0 0.0
        %1283 = vmatprep.subr.mxu0 0.0
        %1284 = vmatpush2.msra.mxu0 0.0
        %1285 = vmatprep.subr.mxu0 0.0
        %1286 = vmatpush2.msra.mxu0 0.0
        %1287 = vmatprep.subr.mxu0 0.0
        %1288 = vmatpush2.msra.mxu0 0.0
        %1289 = vmatprep.subr.mxu0 0.0
        %1290 = vmatpush2.msra.mxu0 0.0
        %1291 = vmatprep.subr.mxu0 0.0
        %1292 = vmatpush2.msra.mxu0 0.0
        %1293 = vmatprep.subr.mxu0 0.0
        %1294 = vmatpush2.msra.mxu0 0.0
        %1295 = vmatprep.subr.mxu0 0.0
        %1296 = vmatpush2.msra.mxu0 0.0
        %1297 = vmatprep.subr.mxu0 0.0
        %1298 = vmatpush2.msra.mxu0 0.0
        %1299 = vmatprep.mubr.f32.mxu0 0.0
        %1300 = vmatmul.mubr.f32.gmra.mxu0 %v1233
        %v1301 = vpop.f32.mrf.mxu0
        %v1302 = vadd.f32 0.0, %v1301
        %v1303 = vpop.f32.mrf.mxu0
        %1304 = vdwg.mxu0
        %1305 = vrot.lane.b32.xlu0 %v711, 56
        %v1306 = vpop.permute.xlu0 %1305
        %v1309 = vsel %vm729, %v1222, 0
        %1311 = vmatprep.subr.mxu0 0.0
        %1312 = vmatpush1.msra.mxu0 0.0
        %1313 = vmatprep.subr.mxu0 0.0
        %1314 = vmatpush1.msra.mxu0 0.0
        %1315 = vmatprep.subr.mxu0 0.0
        %1316 = vmatpush1.msra.mxu0 0.0
        %1317 = vmatprep.subr.mxu0 0.0
        %1318 = vmatpush1.msra.mxu0 0.0
        %1319 = vmatprep.subr.mxu0 0.0
        %1320 = vmatpush1.msra.mxu0 0.0
        %1321 = vmatprep.subr.mxu0 0.0
        %1322 = vmatpush1.msra.mxu0 0.0
        %1323 = vmatprep.subr.mxu0 0.0
        %1324 = vmatpush1.msra.mxu0 0.0
        %1325 = vmatprep.subr.mxu0 0.0
        %1326 = vmatpush1.msra.mxu0 0.0
        %1327 = vmatprep.subr.mxu0 0.0
        %1328 = vmatpush1.msra.mxu0 0.0
        %1329 = vmatprep.subr.mxu0 0.0
        %1330 = vmatpush1.msra.mxu0 0.0
        %1331 = vmatprep.subr.mxu0 0.0
        %1332 = vmatpush1.msra.mxu0 0.0
        %1333 = vmatprep.subr.mxu0 0.0
        %1334 = vmatpush1.msra.mxu0 0.0
        %1335 = vmatprep.subr.mxu0 0.0
        %1336 = vmatpush1.msra.mxu0 0.0
        %1337 = vmatprep.subr.mxu0 0.0
        %1338 = vmatpush1.msra.mxu0 0.0
        %1339 = vmatprep.subr.mxu0 0.0
        %1340 = vmatpush1.msra.mxu0 0.0
        %1341 = vmatprep.subr.mxu0 0.0
        %1342 = vmatpush1.msra.mxu0 %v1306
        %1343 = vmatprep.subr.mxu0 0.0
        %1344 = vmatpush2.msra.mxu0 0.0
        %1345 = vmatprep.subr.mxu0 0.0
        %1346 = vmatpush2.msra.mxu0 0.0
        %1347 = vmatprep.subr.mxu0 0.0
        %1348 = vmatpush2.msra.mxu0 0.0
        %1349 = vmatprep.subr.mxu0 0.0
        %1350 = vmatpush2.msra.mxu0 0.0
        %1351 = vmatprep.subr.mxu0 0.0
        %1352 = vmatpush2.msra.mxu0 0.0
        %1353 = vmatprep.subr.mxu0 0.0
        %1354 = vmatpush2.msra.mxu0 0.0
        %1355 = vmatprep.subr.mxu0 0.0
        %1356 = vmatpush2.msra.mxu0 0.0
        %1357 = vmatprep.subr.mxu0 0.0
        %1358 = vmatpush2.msra.mxu0 0.0
        %1359 = vmatprep.subr.mxu0 0.0
        %1360 = vmatpush2.msra.mxu0 0.0
        %1361 = vmatprep.subr.mxu0 0.0
        %1362 = vmatpush2.msra.mxu0 0.0
        %1363 = vmatprep.subr.mxu0 0.0
        %1364 = vmatpush2.msra.mxu0 0.0
        %1365 = vmatprep.subr.mxu0 0.0
        %1366 = vmatpush2.msra.mxu0 0.0
        %1367 = vmatprep.subr.mxu0 0.0
        %1368 = vmatpush2.msra.mxu0 0.0
        %1369 = vmatprep.subr.mxu0 0.0
        %1370 = vmatpush2.msra.mxu0 0.0
        %1371 = vmatprep.subr.mxu0 0.0
        %1372 = vmatpush2.msra.mxu0 0.0
        %1373 = vmatprep.subr.mxu0 0.0
        %1374 = vmatpush2.msra.mxu0 0.0
        %1375 = vmatprep.mubr.f32.mxu0 0.0
        %1376 = vmatmul.mubr.f32.gmra.mxu0 %v1309
        %v1377 = vpop.f32.mrf.mxu0
        %v1378 = vadd.f32 0.0, %v1377
        %v1379 = vpop.f32.mrf.mxu0
        %1380 = vdwg.mxu0
        %v1381 = vrcp.pop %v1225
        %v1382 = vrcp.pop %v1228
        %v1383 = vmul.f32 %v1302, %v1381
        %v1384 = vmul.f32 %v1378, %v1382
        %1385 = vrot.lane.b32.xlu0 %v706, 112
        %v1386 = vpop.permute.xlu0 %1385
        %1387 = vrot.lane.b32.xlu0 %v706, 80
        %v1388 = vpop.permute.xlu0 %1387
        %v1389 = vsel %vm729, %v1386, 0
        %v1391 = vsel %vm729, %v1388, 0
        %1393 = vmatprep.subr.mxu0 0.0
        %1394 = vmatpush1.xpose.msra.mxu0 0.0
        %1395 = vmatprep.subr.mxu0 0.0
        %1396 = vmatpush1.xpose.msra.mxu0 0.0
        %1397 = vmatprep.subr.mxu0 0.0
        %1398 = vmatpush1.xpose.msra.mxu0 0.0
        %1399 = vmatprep.subr.mxu0 0.0
        %1400 = vmatpush1.xpose.msra.mxu0 0.0
        %1401 = vmatprep.subr.mxu0 0.0
        %1402 = vmatpush1.xpose.msra.mxu0 0.0
        %1403 = vmatprep.subr.mxu0 0.0
        %1404 = vmatpush1.xpose.msra.mxu0 0.0
        %1405 = vmatprep.subr.mxu0 0.0
        %1406 = vmatpush1.xpose.msra.mxu0 0.0
        %1407 = vmatprep.subr.mxu0 0.0
        %1408 = vmatpush1.xpose.msra.mxu0 0.0
        %1409 = vmatprep.subr.mxu0 0.0
        %1410 = vmatpush1.xpose.msra.mxu0 0.0
        %1411 = vmatprep.subr.mxu0 0.0
        %1412 = vmatpush1.xpose.msra.mxu0 0.0
        %1413 = vmatprep.subr.mxu0 0.0
        %1414 = vmatpush1.xpose.msra.mxu0 0.0
        %1415 = vmatprep.subr.mxu0 0.0
        %1416 = vmatpush1.xpose.msra.mxu0 0.0
        %1417 = vmatprep.subr.mxu0 0.0
        %1418 = vmatpush1.xpose.msra.mxu0 0.0
        %1419 = vmatprep.subr.mxu0 0.0
        %1420 = vmatpush1.xpose.msra.mxu0 0.0
        %1421 = vmatprep.subr.mxu0 0.0
        %1422 = vmatpush1.xpose.msra.mxu0 0.0
        %1423 = vmatprep.subr.mxu0 0.0
        %1424 = vmatpush1.xpose.msra.mxu0 %v1391
        %1425 = vmatprep.subr.mxu0 0.0
        %1426 = vmatpush2.xpose.msra.mxu0 0.0
        %1427 = vmatprep.subr.mxu0 0.0
        %1428 = vmatpush2.xpose.msra.mxu0 0.0
        %1429 = vmatprep.subr.mxu0 0.0
        %1430 = vmatpush2.xpose.msra.mxu0 0.0
        %1431 = vmatprep.subr.mxu0 0.0
        %1432 = vmatpush2.xpose.msra.mxu0 0.0
        %1433 = vmatprep.subr.mxu0 0.0
        %1434 = vmatpush2.xpose.msra.mxu0 0.0
        %1435 = vmatprep.subr.mxu0 0.0
        %1436 = vmatpush2.xpose.msra.mxu0 0.0
        %1437 = vmatprep.subr.mxu0 0.0
        %1438 = vmatpush2.xpose.msra.mxu0 0.0
        %1439 = vmatprep.subr.mxu0 0.0
        %1440 = vmatpush2.xpose.msra.mxu0 0.0
        %1441 = vmatprep.subr.mxu0 0.0
        %1442 = vmatpush2.xpose.msra.mxu0 0.0
        %1443 = vmatprep.subr.mxu0 0.0
        %1444 = vmatpush2.xpose.msra.mxu0 0.0
        %1445 = vmatprep.subr.mxu0 0.0
        %1446 = vmatpush2.xpose.msra.mxu0 0.0
        %1447 = vmatprep.subr.mxu0 0.0
        %1448 = vmatpush2.xpose.msra.mxu0 0.0
        %1449 = vmatprep.subr.mxu0 0.0
        %1450 = vmatpush2.xpose.msra.mxu0 0.0
        %1451 = vmatprep.subr.mxu0 0.0
        %1452 = vmatpush2.xpose.msra.mxu0 0.0
        %1453 = vmatprep.subr.mxu0 0.0
        %1454 = vmatpush2.xpose.msra.mxu0 0.0
        %1455 = vmatprep.subr.mxu0 0.0
        %1456 = vmatpush2.xpose.msra.mxu0 0.0
        %1457 = vmatprep.mubr.f32.mxu0 0.0
        %1458 = vmatmul.mubr.f32.gmra.mxu0 %v1389
        %v1459 = vpop.f32.mrf.mxu0
        %v1460 = vadd.f32 %v719, %v1459
        %v1461 = vpop.f32.mrf.mxu0
        %1462 = vdwg.mxu0
        %1463 = vrot.lane.b32.xlu0 %v711, 112
        %v1464 = vpop.permute.xlu0 %1463
        %1465 = vrot.lane.b32.xlu0 %v711, 80
        %v1466 = vpop.permute.xlu0 %1465
        %v1467 = vsel %vm729, %v1464, 0
        %v1469 = vsel %vm729, %v1466, 0
        %1471 = vmatprep.subr.mxu0 0.0
        %1472 = vmatpush1.xpose.msra.mxu0 0.0
        %1473 = vmatprep.subr.mxu0 0.0
        %1474 = vmatpush1.xpose.msra.mxu0 0.0
        %1475 = vmatprep.subr.mxu0 0.0
        %1476 = vmatpush1.xpose.msra.mxu0 0.0
        %1477 = vmatprep.subr.mxu0 0.0
        %1478 = vmatpush1.xpose.msra.mxu0 0.0
        %1479 = vmatprep.subr.mxu0 0.0
        %1480 = vmatpush1.xpose.msra.mxu0 0.0
        %1481 = vmatprep.subr.mxu0 0.0
        %1482 = vmatpush1.xpose.msra.mxu0 0.0
        %1483 = vmatprep.subr.mxu0 0.0
        %1484 = vmatpush1.xpose.msra.mxu0 0.0
        %1485 = vmatprep.subr.mxu0 0.0
        %1486 = vmatpush1.xpose.msra.mxu0 0.0
        %1487 = vmatprep.subr.mxu0 0.0
        %1488 = vmatpush1.xpose.msra.mxu0 0.0
        %1489 = vmatprep.subr.mxu0 0.0
        %1490 = vmatpush1.xpose.msra.mxu0 0.0
        %1491 = vmatprep.subr.mxu0 0.0
        %1492 = vmatpush1.xpose.msra.mxu0 0.0
        %1493 = vmatprep.subr.mxu0 0.0
        %1494 = vmatpush1.xpose.msra.mxu0 0.0
        %1495 = vmatprep.subr.mxu0 0.0
        %1496 = vmatpush1.xpose.msra.mxu0 0.0
        %1497 = vmatprep.subr.mxu0 0.0
        %1498 = vmatpush1.xpose.msra.mxu0 0.0
        %1499 = vmatprep.subr.mxu0 0.0
        %1500 = vmatpush1.xpose.msra.mxu0 0.0
        %1501 = vmatprep.subr.mxu0 0.0
        %1502 = vmatpush1.xpose.msra.mxu0 %v1469
        %1503 = vmatprep.subr.mxu0 0.0
        %1504 = vmatpush2.xpose.msra.mxu0 0.0
        %1505 = vmatprep.subr.mxu0 0.0
        %1506 = vmatpush2.xpose.msra.mxu0 0.0
        %1507 = vmatprep.subr.mxu0 0.0
        %1508 = vmatpush2.xpose.msra.mxu0 0.0
        %1509 = vmatprep.subr.mxu0 0.0
        %1510 = vmatpush2.xpose.msra.mxu0 0.0
        %1511 = vmatprep.subr.mxu0 0.0
        %1512 = vmatpush2.xpose.msra.mxu0 0.0
        %1513 = vmatprep.subr.mxu0 0.0
        %1514 = vmatpush2.xpose.msra.mxu0 0.0
        %1515 = vmatprep.subr.mxu0 0.0
        %1516 = vmatpush2.xpose.msra.mxu0 0.0
        %1517 = vmatprep.subr.mxu0 0.0
        %1518 = vmatpush2.xpose.msra.mxu0 0.0
        %1519 = vmatprep.subr.mxu0 0.0
        %1520 = vmatpush2.xpose.msra.mxu0 0.0
        %1521 = vmatprep.subr.mxu0 0.0
        %1522 = vmatpush2.xpose.msra.mxu0 0.0
        %1523 = vmatprep.subr.mxu0 0.0
        %1524 = vmatpush2.xpose.msra.mxu0 0.0
        %1525 = vmatprep.subr.mxu0 0.0
        %1526 = vmatpush2.xpose.msra.mxu0 0.0
        %1527 = vmatprep.subr.mxu0 0.0
        %1528 = vmatpush2.xpose.msra.mxu0 0.0
        %1529 = vmatprep.subr.mxu0 0.0
        %1530 = vmatpush2.xpose.msra.mxu0 0.0
        %1531 = vmatprep.subr.mxu0 0.0
        %1532 = vmatpush2.xpose.msra.mxu0 0.0
        %1533 = vmatprep.subr.mxu0 0.0
        %1534 = vmatpush2.xpose.msra.mxu0 0.0
        %1535 = vmatprep.mubr.f32.mxu0 0.0
        %1536 = vmatmul.mubr.f32.gmra.mxu0 %v1467
        %v1537 = vpop.f32.mrf.mxu0
        %v1538 = vadd.f32 %v723, %v1537
        %v1539 = vpop.f32.mrf.mxu0
        %1540 = vdwg.mxu0
        %v1541 = vsel %vm729, %v1460, -inf
        %1542 = vmax.xlane.f32.xlu0 %v1541
        %v1543 = vpop.xlane.xlu0 %1542
        %v1544 = vsel %vm729, %v1538, -inf
        %1545 = vmax.xlane.f32.xlu0 %v1544
        %v1546 = vpop.xlane.xlu0 %1545
        %v1547 = vsub.f32 %v1460, %v1543
        %v1548 = vsub.f32 %v1538, %v1546
        %v1549 = vmul.f32 %v1547, 1.442695
        %v1550 = vpow.pop %v1549
        %v1551 = vmul.f32 %v1548, 1.442695
        %v1552 = vpow.pop %v1551
        %v1553 = vsel %vm729, %v1550, 0.0
        %1554 = vadd.xlane.f32.xlu0 %v1553
        %v1555 = vpop.xlane.xlu0 %1554
        %v1556 = vsel %vm729, %v1552, 0.0
        %1557 = vadd.xlane.f32.xlu0 %v1556
        %v1558 = vpop.xlane.xlu0 %1557
        %1559 = vrot.lane.b32.xlu0 %v706, 48
        %v1560 = vpop.permute.xlu0 %1559
        %v1563 = vsel %vm729, %v1550, 0
        %1565 = vmatprep.subr.mxu0 0.0
        %1566 = vmatpush1.msra.mxu0 0.0
        %1567 = vmatprep.subr.mxu0 0.0
        %1568 = vmatpush1.msra.mxu0 0.0
        %1569 = vmatprep.subr.mxu0 0.0
        %1570 = vmatpush1.msra.mxu0 0.0
        %1571 = vmatprep.subr.mxu0 0.0
        %1572 = vmatpush1.msra.mxu0 0.0
        %1573 = vmatprep.subr.mxu0 0.0
        %1574 = vmatpush1.msra.mxu0 0.0
        %1575 = vmatprep.subr.mxu0 0.0
        %1576 = vmatpush1.msra.mxu0 0.0
        %1577 = vmatprep.subr.mxu0 0.0
        %1578 = vmatpush1.msra.mxu0 0.0
        %1579 = vmatprep.subr.mxu0 0.0
        %1580 = vmatpush1.msra.mxu0 0.0
        %1581 = vmatprep.subr.mxu0 0.0
        %1582 = vmatpush1.msra.mxu0 0.0
        %1583 = vmatprep.subr.mxu0 0.0
        %1584 = vmatpush1.msra.mxu0 0.0
        %1585 = vmatprep.subr.mxu0 0.0
        %1586 = vmatpush1.msra.mxu0 0.0
        %1587 = vmatprep.subr.mxu0 0.0
        %1588 = vmatpush1.msra.mxu0 0.0
        %1589 = vmatprep.subr.mxu0 0.0
        %1590 = vmatpush1.msra.mxu0 0.0
        %1591 = vmatprep.subr.mxu0 0.0
        %1592 = vmatpush1.msra.mxu0 0.0
        %1593 = vmatprep.subr.mxu0 0.0
        %1594 = vmatpush1.msra.mxu0 0.0
        %1595 = vmatprep.subr.mxu0 0.0
        %1596 = vmatpush1.msra.mxu0 %v1560
        %1597 = vmatprep.subr.mxu0 0.0
        %1598 = vmatpush2.msra.mxu0 0.0
        %1599 = vmatprep.subr.mxu0 0.0
        %1600 = vmatpush2.msra.mxu0 0.0
        %1601 = vmatprep.subr.mxu0 0.0
        %1602 = vmatpush2.msra.mxu0 0.0
        %1603 = vmatprep.subr.mxu0 0.0
        %1604 = vmatpush2.msra.mxu0 0.0
        %1605 = vmatprep.subr.mxu0 0.0
        %1606 = vmatpush2.msra.mxu0 0.0
        %1607 = vmatprep.subr.mxu0 0.0
        %1608 = vmatpush2.msra.mxu0 0.0
        %1609 = vmatprep.subr.mxu0 0.0
        %1610 = vmatpush2.msra.mxu0 0.0
        %1611 = vmatprep.subr.mxu0 0.0
        %1612 = vmatpush2.msra.mxu0 0.0
        %1613 = vmatprep.subr.mxu0 0.0
        %1614 = vmatpush2.msra.mxu0 0.0
        %1615 = vmatprep.subr.mxu0 0.0
        %1616 = vmatpush2.msra.mxu0 0.0
        %1617 = vmatprep.subr.mxu0 0.0
        %1618 = vmatpush2.msra.mxu0 0.0
        %1619 = vmatprep.subr.mxu0 0.0
        %1620 = vmatpush2.msra.mxu0 0.0
        %1621 = vmatprep.subr.mxu0 0.0
        %1622 = vmatpush2.msra.mxu0 0.0
        %1623 = vmatprep.subr.mxu0 0.0
        %1624 = vmatpush2.msra.mxu0 0.0
        %1625 = vmatprep.subr.mxu0 0.0
        %1626 = vmatpush2.msra.mxu0 0.0
        %1627 = vmatprep.subr.mxu0 0.0
        %1628 = vmatpush2.msra.mxu0 0.0
        %1629 = vmatprep.mubr.f32.mxu0 0.0
        %1630 = vmatmul.mubr.f32.gmra.mxu0 %v1563
        %v1631 = vpop.f32.mrf.mxu0
        %v1632 = vadd.f32 0.0, %v1631
        %v1633 = vpop.f32.mrf.mxu0
        %1634 = vdwg.mxu0
        %1635 = vrot.lane.b32.xlu0 %v711, 48
        %v1636 = vpop.permute.xlu0 %1635
        %v1639 = vsel %vm729, %v1552, 0
        %1641 = vmatprep.subr.mxu0 0.0
        %1642 = vmatpush1.msra.mxu0 0.0
        %1643 = vmatprep.subr.mxu0 0.0
        %1644 = vmatpush1.msra.mxu0 0.0
        %1645 = vmatprep.subr.mxu0 0.0
        %1646 = vmatpush1.msra.mxu0 0.0
        %1647 = vmatprep.subr.mxu0 0.0
        %1648 = vmatpush1.msra.mxu0 0.0
        %1649 = vmatprep.subr.mxu0 0.0
        %1650 = vmatpush1.msra.mxu0 0.0
        %1651 = vmatprep.subr.mxu0 0.0
        %1652 = vmatpush1.msra.mxu0 0.0
        %1653 = vmatprep.subr.mxu0 0.0
        %1654 = vmatpush1.msra.mxu0 0.0
        %1655 = vmatprep.subr.mxu0 0.0
        %1656 = vmatpush1.msra.mxu0 0.0
        %1657 = vmatprep.subr.mxu0 0.0
        %1658 = vmatpush1.msra.mxu0 0.0
        %1659 = vmatprep.subr.mxu0 0.0
        %1660 = vmatpush1.msra.mxu0 0.0
        %1661 = vmatprep.subr.mxu0 0.0
        %1662 = vmatpush1.msra.mxu0 0.0
        %1663 = vmatprep.subr.mxu0 0.0
        %1664 = vmatpush1.msra.mxu0 0.0
        %1665 = vmatprep.subr.mxu0 0.0
        %1666 = vmatpush1.msra.mxu0 0.0
        %1667 = vmatprep.subr.mxu0 0.0
        %1668 = vmatpush1.msra.mxu0 0.0
        %1669 = vmatprep.subr.mxu0 0.0
        %1670 = vmatpush1.msra.mxu0 0.0
        %1671 = vmatprep.subr.mxu0 0.0
        %1672 = vmatpush1.msra.mxu0 %v1636
        %1673 = vmatprep.subr.mxu0 0.0
        %1674 = vmatpush2.msra.mxu0 0.0
        %1675 = vmatprep.subr.mxu0 0.0
        %1676 = vmatpush2.msra.mxu0 0.0
        %1677 = vmatprep.subr.mxu0 0.0
        %1678 = vmatpush2.msra.mxu0 0.0
        %1679 = vmatprep.subr.mxu0 0.0
        %1680 = vmatpush2.msra.mxu0 0.0
        %1681 = vmatprep.subr.mxu0 0.0
        %1682 = vmatpush2.msra.mxu0 0.0
        %1683 = vmatprep.subr.mxu0 0.0
        %1684 = vmatpush2.msra.mxu0 0.0
        %1685 = vmatprep.subr.mxu0 0.0
        %1686 = vmatpush2.msra.mxu0 0.0
        %1687 = vmatprep.subr.mxu0 0.0
        %1688 = vmatpush2.msra.mxu0 0.0
        %1689 = vmatprep.subr.mxu0 0.0
        %1690 = vmatpush2.msra.mxu0 0.0
        %1691 = vmatprep.subr.mxu0 0.0
        %1692 = vmatpush2.msra.mxu0 0.0
        %1693 = vmatprep.subr.mxu0 0.0
        %1694 = vmatpush2.msra.mxu0 0.0
        %1695 = vmatprep.subr.mxu0 0.0
        %1696 = vmatpush2.msra.mxu0 0.0
        %1697 = vmatprep.subr.mxu0 0.0
        %1698 = vmatpush2.msra.mxu0 0.0
        %1699 = vmatprep.subr.mxu0 0.0
        %1700 = vmatpush2.msra.mxu0 0.0
        %1701 = vmatprep.subr.mxu0 0.0
        %1702 = vmatpush2.msra.mxu0 0.0
        %1703 = vmatprep.subr.mxu0 0.0
        %1704 = vmatpush2.msra.mxu0 0.0
        %1705 = vmatprep.mubr.f32.mxu0 0.0
        %1706 = vmatmul.mubr.f32.gmra.mxu0 %v1639
        %v1707 = vpop.f32.mrf.mxu0
        %v1708 = vadd.f32 0.0, %v1707
        %v1709 = vpop.f32.mrf.mxu0
        %1710 = vdwg.mxu0
        %v1711 = vrcp.pop %v1555
        %v1712 = vrcp.pop %v1558
        %v1713 = vmul.f32 %v1632, %v1711
        %v1714 = vmul.f32 %v1708, %v1712
        %1715 = vrot.lane.b32.xlu0 %v706, 104
        %v1716 = vpop.permute.xlu0 %1715
        %1717 = vrot.lane.b32.xlu0 %v706, 72
        %v1718 = vpop.permute.xlu0 %1717
        %v1719 = vsel %vm729, %v1716, 0
        %v1721 = vsel %vm729, %v1718, 0
        %1723 = vmatprep.subr.mxu0 0.0
        %1724 = vmatpush1.xpose.msra.mxu0 0.0
        %1725 = vmatprep.subr.mxu0 0.0
        %1726 = vmatpush1.xpose.msra.mxu0 0.0
        %1727 = vmatprep.subr.mxu0 0.0
        %1728 = vmatpush1.xpose.msra.mxu0 0.0
        %1729 = vmatprep.subr.mxu0 0.0
        %1730 = vmatpush1.xpose.msra.mxu0 0.0
        %1731 = vmatprep.subr.mxu0 0.0
        %1732 = vmatpush1.xpose.msra.mxu0 0.0
        %1733 = vmatprep.subr.mxu0 0.0
        %1734 = vmatpush1.xpose.msra.mxu0 0.0
        %1735 = vmatprep.subr.mxu0 0.0
        %1736 = vmatpush1.xpose.msra.mxu0 0.0
        %1737 = vmatprep.subr.mxu0 0.0
        %1738 = vmatpush1.xpose.msra.mxu0 0.0
        %1739 = vmatprep.subr.mxu0 0.0
        %1740 = vmatpush1.xpose.msra.mxu0 0.0
        %1741 = vmatprep.subr.mxu0 0.0
        %1742 = vmatpush1.xpose.msra.mxu0 0.0
        %1743 = vmatprep.subr.mxu0 0.0
        %1744 = vmatpush1.xpose.msra.mxu0 0.0
        %1745 = vmatprep.subr.mxu0 0.0
        %1746 = vmatpush1.xpose.msra.mxu0 0.0
        %1747 = vmatprep.subr.mxu0 0.0
        %1748 = vmatpush1.xpose.msra.mxu0 0.0
        %1749 = vmatprep.subr.mxu0 0.0
        %1750 = vmatpush1.xpose.msra.mxu0 0.0
        %1751 = vmatprep.subr.mxu0 0.0
        %1752 = vmatpush1.xpose.msra.mxu0 0.0
        %1753 = vmatprep.subr.mxu0 0.0
        %1754 = vmatpush1.xpose.msra.mxu0 %v1721
        %1755 = vmatprep.subr.mxu0 0.0
        %1756 = vmatpush2.xpose.msra.mxu0 0.0
        %1757 = vmatprep.subr.mxu0 0.0
        %1758 = vmatpush2.xpose.msra.mxu0 0.0
        %1759 = vmatprep.subr.mxu0 0.0
        %1760 = vmatpush2.xpose.msra.mxu0 0.0
        %1761 = vmatprep.subr.mxu0 0.0
        %1762 = vmatpush2.xpose.msra.mxu0 0.0
        %1763 = vmatprep.subr.mxu0 0.0
        %1764 = vmatpush2.xpose.msra.mxu0 0.0
        %1765 = vmatprep.subr.mxu0 0.0
        %1766 = vmatpush2.xpose.msra.mxu0 0.0
        %1767 = vmatprep.subr.mxu0 0.0
        %1768 = vmatpush2.xpose.msra.mxu0 0.0
        %1769 = vmatprep.subr.mxu0 0.0
        %1770 = vmatpush2.xpose.msra.mxu0 0.0
        %1771 = vmatprep.subr.mxu0 0.0
        %1772 = vmatpush2.xpose.msra.mxu0 0.0
        %1773 = vmatprep.subr.mxu0 0.0
        %1774 = vmatpush2.xpose.msra.mxu0 0.0
        %1775 = vmatprep.subr.mxu0 0.0
        %1776 = vmatpush2.xpose.msra.mxu0 0.0
        %1777 = vmatprep.subr.mxu0 0.0
        %1778 = vmatpush2.xpose.msra.mxu0 0.0
        %1779 = vmatprep.subr.mxu0 0.0
        %1780 = vmatpush2.xpose.msra.mxu0 0.0
        %1781 = vmatprep.subr.mxu0 0.0
        %1782 = vmatpush2.xpose.msra.mxu0 0.0
        %1783 = vmatprep.subr.mxu0 0.0
        %1784 = vmatpush2.xpose.msra.mxu0 0.0
        %1785 = vmatprep.subr.mxu0 0.0
        %1786 = vmatpush2.xpose.msra.mxu0 0.0
        %1787 = vmatprep.mubr.f32.mxu0 0.0
        %1788 = vmatmul.mubr.f32.gmra.mxu0 %v1719
        %v1789 = vpop.f32.mrf.mxu0
        %v1790 = vadd.f32 %v719, %v1789
        %v1791 = vpop.f32.mrf.mxu0
        %1792 = vdwg.mxu0
        %1793 = vrot.lane.b32.xlu0 %v711, 104
        %v1794 = vpop.permute.xlu0 %1793
        %1795 = vrot.lane.b32.xlu0 %v711, 72
        %v1796 = vpop.permute.xlu0 %1795
        %v1797 = vsel %vm729, %v1794, 0
        %v1799 = vsel %vm729, %v1796, 0
        %1801 = vmatprep.subr.mxu0 0.0
        %1802 = vmatpush1.xpose.msra.mxu0 0.0
        %1803 = vmatprep.subr.mxu0 0.0
        %1804 = vmatpush1.xpose.msra.mxu0 0.0
        %1805 = vmatprep.subr.mxu0 0.0
        %1806 = vmatpush1.xpose.msra.mxu0 0.0
        %1807 = vmatprep.subr.mxu0 0.0
        %1808 = vmatpush1.xpose.msra.mxu0 0.0
        %1809 = vmatprep.subr.mxu0 0.0
        %1810 = vmatpush1.xpose.msra.mxu0 0.0
        %1811 = vmatprep.subr.mxu0 0.0
        %1812 = vmatpush1.xpose.msra.mxu0 0.0
        %1813 = vmatprep.subr.mxu0 0.0
        %1814 = vmatpush1.xpose.msra.mxu0 0.0
        %1815 = vmatprep.subr.mxu0 0.0
        %1816 = vmatpush1.xpose.msra.mxu0 0.0
        %1817 = vmatprep.subr.mxu0 0.0
        %1818 = vmatpush1.xpose.msra.mxu0 0.0
        %1819 = vmatprep.subr.mxu0 0.0
        %1820 = vmatpush1.xpose.msra.mxu0 0.0
        %1821 = vmatprep.subr.mxu0 0.0
        %1822 = vmatpush1.xpose.msra.mxu0 0.0
        %1823 = vmatprep.subr.mxu0 0.0
        %1824 = vmatpush1.xpose.msra.mxu0 0.0
        %1825 = vmatprep.subr.mxu0 0.0
        %1826 = vmatpush1.xpose.msra.mxu0 0.0
        %1827 = vmatprep.subr.mxu0 0.0
        %1828 = vmatpush1.xpose.msra.mxu0 0.0
        %1829 = vmatprep.subr.mxu0 0.0
        %1830 = vmatpush1.xpose.msra.mxu0 0.0
        %1831 = vmatprep.subr.mxu0 0.0
        %1832 = vmatpush1.xpose.msra.mxu0 %v1799
        %1833 = vmatprep.subr.mxu0 0.0
        %1834 = vmatpush2.xpose.msra.mxu0 0.0
        %1835 = vmatprep.subr.mxu0 0.0
        %1836 = vmatpush2.xpose.msra.mxu0 0.0
        %1837 = vmatprep.subr.mxu0 0.0
        %1838 = vmatpush2.xpose.msra.mxu0 0.0
        %1839 = vmatprep.subr.mxu0 0.0
        %1840 = vmatpush2.xpose.msra.mxu0 0.0
        %1841 = vmatprep.subr.mxu0 0.0
        %1842 = vmatpush2.xpose.msra.mxu0 0.0
        %1843 = vmatprep.subr.mxu0 0.0
        %1844 = vmatpush2.xpose.msra.mxu0 0.0
        %1845 = vmatprep.subr.mxu0 0.0
        %1846 = vmatpush2.xpose.msra.mxu0 0.0
        %1847 = vmatprep.subr.mxu0 0.0
        %1848 = vmatpush2.xpose.msra.mxu0 0.0
        %1849 = vmatprep.subr.mxu0 0.0
        %1850 = vmatpush2.xpose.msra.mxu0 0.0
        %1851 = vmatprep.subr.mxu0 0.0
        %1852 = vmatpush2.xpose.msra.mxu0 0.0
        %1853 = vmatprep.subr.mxu0 0.0
        %1854 = vmatpush2.xpose.msra.mxu0 0.0
        %1855 = vmatprep.subr.mxu0 0.0
        %1856 = vmatpush2.xpose.msra.mxu0 0.0
        %1857 = vmatprep.subr.mxu0 0.0
        %1858 = vmatpush2.xpose.msra.mxu0 0.0
        %1859 = vmatprep.subr.mxu0 0.0
        %1860 = vmatpush2.xpose.msra.mxu0 0.0
        %1861 = vmatprep.subr.mxu0 0.0
        %1862 = vmatpush2.xpose.msra.mxu0 0.0
        %1863 = vmatprep.subr.mxu0 0.0
        %1864 = vmatpush2.xpose.msra.mxu0 0.0
        %1865 = vmatprep.mubr.f32.mxu0 0.0
        %1866 = vmatmul.mubr.f32.gmra.mxu0 %v1797
        %v1867 = vpop.f32.mrf.mxu0
        %v1868 = vadd.f32 %v723, %v1867
        %v1869 = vpop.f32.mrf.mxu0
        %1870 = vdwg.mxu0
        %v1871 = vsel %vm729, %v1790, -inf
        %1872 = vmax.xlane.f32.xlu0 %v1871
        %v1873 = vpop.xlane.xlu0 %1872
        %v1874 = vsel %vm729, %v1868, -inf
        %1875 = vmax.xlane.f32.xlu0 %v1874
        %v1876 = vpop.xlane.xlu0 %1875
        %v1877 = vsub.f32 %v1790, %v1873
        %v1878 = vsub.f32 %v1868, %v1876
        %v1879 = vmul.f32 %v1877, 1.442695
        %v1880 = vpow.pop %v1879
        %v1881 = vmul.f32 %v1878, 1.442695
        %v1882 = vpow.pop %v1881
        %v1883 = vsel %vm729, %v1880, 0.0
        %1884 = vadd.xlane.f32.xlu0 %v1883
        %v1885 = vpop.xlane.xlu0 %1884
        %v1886 = vsel %vm729, %v1882, 0.0
        %1887 = vadd.xlane.f32.xlu0 %v1886
        %v1888 = vpop.xlane.xlu0 %1887
        %1889 = vrot.lane.b32.xlu0 %v706, 40
        %v1890 = vpop.permute.xlu0 %1889
        %v1893 = vsel %vm729, %v1880, 0
        %1895 = vmatprep.subr.mxu0 0.0
        %1896 = vmatpush1.msra.mxu0 0.0
        %1897 = vmatprep.subr.mxu0 0.0
        %1898 = vmatpush1.msra.mxu0 0.0
        %1899 = vmatprep.subr.mxu0 0.0
        %1900 = vmatpush1.msra.mxu0 0.0
        %1901 = vmatprep.subr.mxu0 0.0
        %1902 = vmatpush1.msra.mxu0 0.0
        %1903 = vmatprep.subr.mxu0 0.0
        %1904 = vmatpush1.msra.mxu0 0.0
        %1905 = vmatprep.subr.mxu0 0.0
        %1906 = vmatpush1.msra.mxu0 0.0
        %1907 = vmatprep.subr.mxu0 0.0
        %1908 = vmatpush1.msra.mxu0 0.0
        %1909 = vmatprep.subr.mxu0 0.0
        %1910 = vmatpush1.msra.mxu0 0.0
        %1911 = vmatprep.subr.mxu0 0.0
        %1912 = vmatpush1.msra.mxu0 0.0
        %1913 = vmatprep.subr.mxu0 0.0
        %1914 = vmatpush1.msra.mxu0 0.0
        %1915 = vmatprep.subr.mxu0 0.0
        %1916 = vmatpush1.msra.mxu0 0.0
        %1917 = vmatprep.subr.mxu0 0.0
        %1918 = vmatpush1.msra.mxu0 0.0
        %1919 = vmatprep.subr.mxu0 0.0
        %1920 = vmatpush1.msra.mxu0 0.0
        %1921 = vmatprep.subr.mxu0 0.0
        %1922 = vmatpush1.msra.mxu0 0.0
        %1923 = vmatprep.subr.mxu0 0.0
        %1924 = vmatpush1.msra.mxu0 0.0
        %1925 = vmatprep.subr.mxu0 0.0
        %1926 = vmatpush1.msra.mxu0 %v1890
        %1927 = vmatprep.subr.mxu0 0.0
        %1928 = vmatpush2.msra.mxu0 0.0
        %1929 = vmatprep.subr.mxu0 0.0
        %1930 = vmatpush2.msra.mxu0 0.0
        %1931 = vmatprep.subr.mxu0 0.0
        %1932 = vmatpush2.msra.mxu0 0.0
        %1933 = vmatprep.subr.mxu0 0.0
        %1934 = vmatpush2.msra.mxu0 0.0
        %1935 = vmatprep.subr.mxu0 0.0
        %1936 = vmatpush2.msra.mxu0 0.0
        %1937 = vmatprep.subr.mxu0 0.0
        %1938 = vmatpush2.msra.mxu0 0.0
        %1939 = vmatprep.subr.mxu0 0.0
        %1940 = vmatpush2.msra.mxu0 0.0
        %1941 = vmatprep.subr.mxu0 0.0
        %1942 = vmatpush2.msra.mxu0 0.0
        %1943 = vmatprep.subr.mxu0 0.0
        %1944 = vmatpush2.msra.mxu0 0.0
        %1945 = vmatprep.subr.mxu0 0.0
        %1946 = vmatpush2.msra.mxu0 0.0
        %1947 = vmatprep.subr.mxu0 0.0
        %1948 = vmatpush2.msra.mxu0 0.0
        %1949 = vmatprep.subr.mxu0 0.0
        %1950 = vmatpush2.msra.mxu0 0.0
        %1951 = vmatprep.subr.mxu0 0.0
        %1952 = vmatpush2.msra.mxu0 0.0
        %1953 = vmatprep.subr.mxu0 0.0
        %1954 = vmatpush2.msra.mxu0 0.0
        %1955 = vmatprep.subr.mxu0 0.0
        %1956 = vmatpush2.msra.mxu0 0.0
        %1957 = vmatprep.subr.mxu0 0.0
        %1958 = vmatpush2.msra.mxu0 0.0
        %1959 = vmatprep.mubr.f32.mxu0 0.0
        %1960 = vmatmul.mubr.f32.gmra.mxu0 %v1893
        %v1961 = vpop.f32.mrf.mxu0
        %v1962 = vadd.f32 0.0, %v1961
        %v1963 = vpop.f32.mrf.mxu0
        %1964 = vdwg.mxu0
        %1965 = vrot.lane.b32.xlu0 %v711, 40
        %v1966 = vpop.permute.xlu0 %1965
        %v1969 = vsel %vm729, %v1882, 0
        %1971 = vmatprep.subr.mxu0 0.0
        %1972 = vmatpush1.msra.mxu0 0.0
        %1973 = vmatprep.subr.mxu0 0.0
        %1974 = vmatpush1.msra.mxu0 0.0
        %1975 = vmatprep.subr.mxu0 0.0
        %1976 = vmatpush1.msra.mxu0 0.0
        %1977 = vmatprep.subr.mxu0 0.0
        %1978 = vmatpush1.msra.mxu0 0.0
        %1979 = vmatprep.subr.mxu0 0.0
        %1980 = vmatpush1.msra.mxu0 0.0
        %1981 = vmatprep.subr.mxu0 0.0
        %1982 = vmatpush1.msra.mxu0 0.0
        %1983 = vmatprep.subr.mxu0 0.0
        %1984 = vmatpush1.msra.mxu0 0.0
        %1985 = vmatprep.subr.mxu0 0.0
        %1986 = vmatpush1.msra.mxu0 0.0
        %1987 = vmatprep.subr.mxu0 0.0
        %1988 = vmatpush1.msra.mxu0 0.0
        %1989 = vmatprep.subr.mxu0 0.0
        %1990 = vmatpush1.msra.mxu0 0.0
        %1991 = vmatprep.subr.mxu0 0.0
        %1992 = vmatpush1.msra.mxu0 0.0
        %1993 = vmatprep.subr.mxu0 0.0
        %1994 = vmatpush1.msra.mxu0 0.0
        %1995 = vmatprep.subr.mxu0 0.0
        %1996 = vmatpush1.msra.mxu0 0.0
        %1997 = vmatprep.subr.mxu0 0.0
        %1998 = vmatpush1.msra.mxu0 0.0
        %1999 = vmatprep.subr.mxu0 0.0
        %2000 = vmatpush1.msra.mxu0 0.0
        %2001 = vmatprep.subr.mxu0 0.0
        %2002 = vmatpush1.msra.mxu0 %v1966
        %2003 = vmatprep.subr.mxu0 0.0
        %2004 = vmatpush2.msra.mxu0 0.0
        %2005 = vmatprep.subr.mxu0 0.0
        %2006 = vmatpush2.msra.mxu0 0.0
        %2007 = vmatprep.subr.mxu0 0.0
        %2008 = vmatpush2.msra.mxu0 0.0
        %2009 = vmatprep.subr.mxu0 0.0
        %2010 = vmatpush2.msra.mxu0 0.0
        %2011 = vmatprep.subr.mxu0 0.0
        %2012 = vmatpush2.msra.mxu0 0.0
        %2013 = vmatprep.subr.mxu0 0.0
        %2014 = vmatpush2.msra.mxu0 0.0
        %2015 = vmatprep.subr.mxu0 0.0
        %2016 = vmatpush2.msra.mxu0 0.0
        %2017 = vmatprep.subr.mxu0 0.0
        %2018 = vmatpush2.msra.mxu0 0.0
        %2019 = vmatprep.subr.mxu0 0.0
        %2020 = vmatpush2.msra.mxu0 0.0
        %2021 = vmatprep.subr.mxu0 0.0
        %2022 = vmatpush2.msra.mxu0 0.0
        %2023 = vmatprep.subr.mxu0 0.0
        %2024 = vmatpush2.msra.mxu0 0.0
        %2025 = vmatprep.subr.mxu0 0.0
        %2026 = vmatpush2.msra.mxu0 0.0
        %2027 = vmatprep.subr.mxu0 0.0
        %2028 = vmatpush2.msra.mxu0 0.0
        %2029 = vmatprep.subr.mxu0 0.0
        %2030 = vmatpush2.msra.mxu0 0.0
        %2031 = vmatprep.subr.mxu0 0.0
        %2032 = vmatpush2.msra.mxu0 0.0
        %2033 = vmatprep.subr.mxu0 0.0
        %2034 = vmatpush2.msra.mxu0 0.0
        %2035 = vmatprep.mubr.f32.mxu0 0.0
        %2036 = vmatmul.mubr.f32.gmra.mxu0 %v1969
        %v2037 = vpop.f32.mrf.mxu0
        %v2038 = vadd.f32 0.0, %v2037
        %v2039 = vpop.f32.mrf.mxu0
        %2040 = vdwg.mxu0
        %v2041 = vrcp.pop %v1885
        %v2042 = vrcp.pop %v1888
        %v2043 = vmul.f32 %v1962, %v2041
        %v2044 = vmul.f32 %v2038, %v2042
        %2047 = vrot.lane.b32.xlu0 %v1383, 8
        %v2048 = vpop.permute.xlu0 %2047
        %2049 = vrot.lane.b32.xlu0 %v1384, 8
        %v2050 = vpop.permute.xlu0 %2049
        %2055 = vrot.lane.b32.xlu0 %v1713, 16
        %v2056 = vpop.permute.xlu0 %2055
        %2057 = vrot.lane.b32.xlu0 %v1714, 16
        %v2058 = vpop.permute.xlu0 %2057
        %2063 = vrot.lane.b32.xlu0 %v2043, 24
        %v2064 = vpop.permute.xlu0 %2063
        %2065 = vrot.lane.b32.xlu0 %v2044, 24
        %v2066 = vpop.permute.xlu0 %2065
        %v2069 = vsel %vm729, %v1053, %v2048
        %v2070 = vsel %vm729, %v1054, %v2050
        %vm2071 = vcmask 130048
        %v2072 = vsel %vm2071, %v2069, %v2056
        %v2073 = vsel %vm2071, %v2070, %v2058
        %vm2074 = vcmask 195584
        %v2075 = vsel %vm2074, %v2072, %v2064
        %v2076 = vsel %vm2074, %v2073, %v2066
        %v2077 = vld [vmem:[%s583] sm:$0xff]
        %v2078 = vld [vmem:[%s583 + $0x8] sm:$0xff]
        %v2079 = vld [vmem:[%s583 + $0x10] sm:$0xff]
        %v2080 = vld [vmem:[%s583 + $0x18] sm:$0xff]
        %v2081 = vld [vmem:[%s586] sm:$0x1]
        %v2083 = vlaneseq
        %v2084 = vshrl.u32 %v2083, 7
        %v2085 = vsub.s32 0, %v2084
        %v2086 = vrot.slane %v2081, %v2085
        %v2089 = vsel %vm632, %v2075, 0
        %v2092 = vsel %vm632, %v2076, 0
        %2094 = vmatprep.subr.mxu0 0.0
        %2095 = vmatpush1.msra.mxu0 0.0
        %2096 = vmatprep.subr.mxu0 0.0
        %2097 = vmatpush1.msra.mxu0 0.0
        %2098 = vmatprep.subr.mxu0 0.0
        %2099 = vmatpush1.msra.mxu0 0.0
        %2100 = vmatprep.subr.mxu0 0.0
        %2101 = vmatpush1.msra.mxu0 0.0
        %2102 = vmatprep.subr.mxu0 0.0
        %2103 = vmatpush1.msra.mxu0 0.0
        %2104 = vmatprep.subr.mxu0 0.0
        %2105 = vmatpush1.msra.mxu0 0.0
        %2106 = vmatprep.subr.mxu0 0.0
        %2107 = vmatpush1.msra.mxu0 0.0
        %2108 = vmatprep.subr.mxu0 0.0
        %2109 = vmatpush1.msra.mxu0 0.0
        %2110 = vmatprep.subr.mxu0 0.0
        %2111 = vmatpush1.msra.mxu0 0.0
        %2112 = vmatprep.subr.mxu0 0.0
        %2113 = vmatpush1.msra.mxu0 0.0
        %2114 = vmatprep.subr.mxu0 0.0
        %2115 = vmatpush1.msra.mxu0 0.0
        %2116 = vmatprep.subr.mxu0 0.0
        %2117 = vmatpush1.msra.mxu0 0.0
        %2118 = vmatprep.subr.mxu0 0.0
        %2119 = vmatpush1.msra.mxu0 %v2080
        %2120 = vmatprep.subr.mxu0 0.0
        %2121 = vmatpush1.msra.mxu0 %v2079
        %2122 = vmatprep.subr.mxu0 0.0
        %2123 = vmatpush1.msra.mxu0 %v2078
        %2124 = vmatprep.subr.mxu0 0.0
        %2125 = vmatpush1.msra.mxu0 %v2077
        %2126 = vmatprep.subr.mxu0 0.0
        %2127 = vmatpush2.msra.mxu0 0.0
        %2128 = vmatprep.subr.mxu0 0.0
        %2129 = vmatpush2.msra.mxu0 0.0
        %2130 = vmatprep.subr.mxu0 0.0
        %2131 = vmatpush2.msra.mxu0 0.0
        %2132 = vmatprep.subr.mxu0 0.0
        %2133 = vmatpush2.msra.mxu0 0.0
        %2134 = vmatprep.subr.mxu0 0.0
        %2135 = vmatpush2.msra.mxu0 0.0
        %2136 = vmatprep.subr.mxu0 0.0
        %2137 = vmatpush2.msra.mxu0 0.0
        %2138 = vmatprep.subr.mxu0 0.0
        %2139 = vmatpush2.msra.mxu0 0.0
        %2140 = vmatprep.subr.mxu0 0.0
        %2141 = vmatpush2.msra.mxu0 0.0
        %2142 = vmatprep.subr.mxu0 0.0
        %2143 = vmatpush2.msra.mxu0 0.0
        %2144 = vmatprep.subr.mxu0 0.0
        %2145 = vmatpush2.msra.mxu0 0.0
        %2146 = vmatprep.subr.mxu0 0.0
        %2147 = vmatpush2.msra.mxu0 0.0
        %2148 = vmatprep.subr.mxu0 0.0
        %2149 = vmatpush2.msra.mxu0 0.0
        %2150 = vmatprep.subr.mxu0 0.0
        %2151 = vmatpush2.msra.mxu0 0.0
        %2152 = vmatprep.subr.mxu0 0.0
        %2153 = vmatpush2.msra.mxu0 0.0
        %2154 = vmatprep.subr.mxu0 0.0
        %2155 = vmatpush2.msra.mxu0 0.0
        %2156 = vmatprep.subr.mxu0 0.0
        %2157 = vmatpush2.msra.mxu0 0.0
        %2158 = vmatprep.mubr.f32.mxu0 0.0
        %2159 = vmatmul.mubr.f32.gmra.mxu0 %v2089
        %v2160 = vpop.f32.mrf.mxu0
        %v2161 = vadd.f32 %v2086, %v2160
        %v2162 = vpop.f32.mrf.mxu0
        %2163 = vmatprep.mubr.f32.mxu0 0.0
        %2164 = vmatmul.mubr.f32.gmra.mxu0 %v2092
        %v2165 = vpop.f32.mrf.mxu0
        %v2166 = vadd.f32 %v2086, %v2165
        %v2167 = vpop.f32.mrf.mxu0
        %2168 = vdwg.mxu0
        %v2169 = vadd.f32 %v2161, %v624
        %v2170 = vadd.f32 %v2166, %v625
        %v2171 = vsel %vm632, %v2169, 0.0
        %2172 = vadd.xlane.f32.xlu0 %v2171
        %v2173 = vpop.xlane.xlu0 %2172
        %v2174 = vsel %vm632, %v2170, 0.0
        %2175 = vadd.xlane.f32.xlu0 %v2174
        %v2176 = vpop.xlane.xlu0 %2175
        %v2177 = vrcp.pop 32.0
        %v2178 = vmul.f32 %v2173, %v2177
        %v2179 = vmul.f32 %v2176, %v2177
        %v2180 = vsub.f32 %v2169, %v2178
        %v2181 = vsub.f32 %v2170, %v2179
        %v2182 = vmul.f32 %v2180, %v2180
        %v2183 = vmul.f32 %v2181, %v2181
        %v2184 = vsel %vm632, %v2182, 0.0
        %2185 = vadd.xlane.f32.xlu0 %v2184
        %v2186 = vpop.xlane.xlu0 %2185
        %v2187 = vsel %vm632, %v2183, 0.0
        %2188 = vadd.xlane.f32.xlu0 %v2187
        %v2189 = vpop.xlane.xlu0 %2188
        %v2190 = vmul.f32 %v2186, %v2177
        %v2191 = vmul.f32 %v2189, %v2177
        %v2192 = vadd.f32 %v2190, 1e-05
        %v2193 = vadd.f32 %v2191, 1e-05
        %v2194 = vrsqrt.pop %v2192
        %v2195 = vrsqrt.pop %v2193
        %v2196 = vmul.f32 %v2180, %v2194
        %v2197 = vmul.f32 %v2181, %v2195
        %v2198 = vld [vmem:[%s589] sm:$0x1]
        %v2200 = vlaneseq
        %v2201 = vshrl.u32 %v2200, 7
        %v2202 = vsub.s32 0, %v2201
        %v2203 = vrot.slane %v2198, %v2202
        %v2205 = vmul.f32 %v2196, %v2203
        %v2206 = vmul.f32 %v2197, %v2203
        %v2207 = vld [vmem:[%s592] sm:$0x1]
        %v2209 = vlaneseq
        %v2210 = vshrl.u32 %v2209, 7
        %v2211 = vsub.s32 0, %v2210
        %v2212 = vrot.slane %v2207, %v2211
        %v2214 = vadd.f32 %v2205, %v2212
        %v2215 = vadd.f32 %v2206, %v2212
        %v2216 = vld [vmem:[%s597] sm:$0xff]
        %v2217 = vld [vmem:[%s597 + $0x8] sm:$0xff]
        %v2218 = vld [vmem:[%s597 + $0x10] sm:$0xff]
        %v2219 = vld [vmem:[%s597 + $0x18] sm:$0xff]
        %v2220 = vld [vmem:[%s600] sm:$0x1]
        %v2222 = vlaneseq
        %v2223 = vshrl.u32 %v2222, 7
        %v2224 = vsub.s32 0, %v2223
        %v2225 = vrot.slane %v2220, %v2224
        %v2228 = vsel %vm632, %v2214, 0
        %v2231 = vsel %vm632, %v2215, 0
        %2233 = vmatprep.subr.mxu0 0.0
        %2234 = vmatpush1.msra.mxu0 0.0
        %2235 = vmatprep.subr.mxu0 0.0
        %2236 = vmatpush1.msra.mxu0 0.0
        %2237 = vmatprep.subr.mxu0 0.0
        %2238 = vmatpush1.msra.mxu0 0.0
        %2239 = vmatprep.subr.mxu0 0.0
        %2240 = vmatpush1.msra.mxu0 0.0
        %2241 = vmatprep.subr.mxu0 0.0
        %2242 = vmatpush1.msra.mxu0 0.0
        %2243 = vmatprep.subr.mxu0 0.0
        %2244 = vmatpush1.msra.mxu0 0.0
        %2245 = vmatprep.subr.mxu0 0.0
        %2246 = vmatpush1.msra.mxu0 0.0
        %2247 = vmatprep.subr.mxu0 0.0
        %2248 = vmatpush1.msra.mxu0 0.0
        %2249 = vmatprep.subr.mxu0 0.0
        %2250 = vmatpush1.msra.mxu0 0.0
        %2251 = vmatprep.subr.mxu0 0.0
        %2252 = vmatpush1.msra.mxu0 0.0
        %2253 = vmatprep.subr.mxu0 0.0
        %2254 = vmatpush1.msra.mxu0 0.0
        %2255 = vmatprep.subr.mxu0 0.0
        %2256 = vmatpush1.msra.mxu0 0.0
        %2257 = vmatprep.subr.mxu0 0.0
        %2258 = vmatpush1.msra.mxu0 %v2219
        %2259 = vmatprep.subr.mxu0 0.0
        %2260 = vmatpush1.msra.mxu0 %v2218
        %2261 = vmatprep.subr.mxu0 0.0
        %2262 = vmatpush1.msra.mxu0 %v2217
        %2263 = vmatprep.subr.mxu0 0.0
        %2264 = vmatpush1.msra.mxu0 %v2216
        %2265 = vmatprep.subr.mxu0 0.0
        %2266 = vmatpush2.msra.mxu0 0.0
        %2267 = vmatprep.subr.mxu0 0.0
        %2268 = vmatpush2.msra.mxu0 0.0
        %2269 = vmatprep.subr.mxu0 0.0
        %2270 = vmatpush2.msra.mxu0 0.0
        %2271 = vmatprep.subr.mxu0 0.0
        %2272 = vmatpush2.msra.mxu0 0.0
        %2273 = vmatprep.subr.mxu0 0.0
        %2274 = vmatpush2.msra.mxu0 0.0
        %2275 = vmatprep.subr.mxu0 0.0
        %2276 = vmatpush2.msra.mxu0 0.0
        %2277 = vmatprep.subr.mxu0 0.0
        %2278 = vmatpush2.msra.mxu0 0.0
        %2279 = vmatprep.subr.mxu0 0.0
        %2280 = vmatpush2.msra.mxu0 0.0
        %2281 = vmatprep.subr.mxu0 0.0
        %2282 = vmatpush2.msra.mxu0 0.0
        %2283 = vmatprep.subr.mxu0 0.0
        %2284 = vmatpush2.msra.mxu0 0.0
        %2285 = vmatprep.subr.mxu0 0.0
        %2286 = vmatpush2.msra.mxu0 0.0
        %2287 = vmatprep.subr.mxu0 0.0
        %2288 = vmatpush2.msra.mxu0 0.0
        %2289 = vmatprep.subr.mxu0 0.0
        %2290 = vmatpush2.msra.mxu0 0.0
        %2291 = vmatprep.subr.mxu0 0.0
        %2292 = vmatpush2.msra.mxu0 0.0
        %2293 = vmatprep.subr.mxu0 0.0
        %2294 = vmatpush2.msra.mxu0 0.0
        %2295 = vmatprep.subr.mxu0 0.0
        %2296 = vmatpush2.msra.mxu0 0.0
        %2297 = vmatprep.mubr.f32.mxu0 0.0
        %2298 = vmatmul.mubr.f32.gmra.mxu0 %v2228
        %v2299 = vpop.f32.mrf.mxu0
        %v2300 = vadd.f32 %v2225, %v2299
        %v2301 = vpop.f32.mrf.mxu0
        %2302 = vmatprep.mubr.f32.mxu0 0.0
        %2303 = vmatmul.mubr.f32.gmra.mxu0 %v2231
        %v2304 = vpop.f32.mrf.mxu0
        %v2305 = vadd.f32 %v2225, %v2304
        %v2306 = vpop.f32.mrf.mxu0
        %2307 = vdwg.mxu0
        %v2308 = vmax.f32 %v2300, 0.0
        %v2309 = vmax.f32 %v2305, 0.0
        %v2310 = vld [vmem:[%s605] sm:$0xff]
        %v2311 = vld [vmem:[%s605 + $0x8] sm:$0xff]
        %v2312 = vld [vmem:[%s605 + $0x10] sm:$0xff]
        %v2313 = vld [vmem:[%s605 + $0x18] sm:$0xff]
        %v2314 = vld [vmem:[%s605 + $0x20] sm:$0xff]
        %v2315 = vld [vmem:[%s605 + $0x28] sm:$0xff]
        %v2316 = vld [vmem:[%s605 + $0x30] sm:$0xff]
        %v2317 = vld [vmem:[%s605 + $0x38] sm:$0xff]
        %v2318 = vld [vmem:[%s608] sm:$0x1]
        %v2320 = vlaneseq
        %v2321 = vshrl.u32 %v2320, 7
        %v2322 = vsub.s32 0, %v2321
        %v2323 = vrot.slane %v2318, %v2322
        %vm2325 = vcmask 523264
        %v2327 = vsel %vm2325, %v2308, 0
        %v2330 = vsel %vm2325, %v2309, 0
        %2332 = vmatprep.subr.mxu0 0.0
        %2333 = vmatpush1.msra.mxu0 0.0
        %2334 = vmatprep.subr.mxu0 0.0
        %2335 = vmatpush1.msra.mxu0 0.0
        %2336 = vmatprep.subr.mxu0 0.0
        %2337 = vmatpush1.msra.mxu0 0.0
        %2338 = vmatprep.subr.mxu0 0.0
        %2339 = vmatpush1.msra.mxu0 0.0
        %2340 = vmatprep.subr.mxu0 0.0
        %2341 = vmatpush1.msra.mxu0 0.0
        %2342 = vmatprep.subr.mxu0 0.0
        %2343 = vmatpush1.msra.mxu0 0.0
        %2344 = vmatprep.subr.mxu0 0.0
        %2345 = vmatpush1.msra.mxu0 0.0
        %2346 = vmatprep.subr.mxu0 0.0
        %2347 = vmatpush1.msra.mxu0 0.0
        %2348 = vmatprep.subr.mxu0 0.0
        %2349 = vmatpush1.msra.mxu0 %v2317
        %2350 = vmatprep.subr.mxu0 0.0
        %2351 = vmatpush1.msra.mxu0 %v2316
        %2352 = vmatprep.subr.mxu0 0.0
        %2353 = vmatpush1.msra.mxu0 %v2315
        %2354 = vmatprep.subr.mxu0 0.0
        %2355 = vmatpush1.msra.mxu0 %v2314
        %2356 = vmatprep.subr.mxu0 0.0
        %2357 = vmatpush1.msra.mxu0 %v2313
        %2358 = vmatprep.subr.mxu0 0.0
        %2359 = vmatpush1.msra.mxu0 %v2312
        %2360 = vmatprep.subr.mxu0 0.0
        %2361 = vmatpush1.msra.mxu0 %v2311
        %2362 = vmatprep.subr.mxu0 0.0
        %2363 = vmatpush1.msra.mxu0 %v2310
        %2364 = vmatprep.subr.mxu0 0.0
        %2365 = vmatpush2.msra.mxu0 0.0
        %2366 = vmatprep.subr.mxu0 0.0
        %2367 = vmatpush2.msra.mxu0 0.0
        %2368 = vmatprep.subr.mxu0 0.0
        %2369 = vmatpush2.msra.mxu0 0.0
        %2370 = vmatprep.subr.mxu0 0.0
        %2371 = vmatpush2.msra.mxu0 0.0
        %2372 = vmatprep.subr.mxu0 0.0
        %2373 = vmatpush2.msra.mxu0 0.0
        %2374 = vmatprep.subr.mxu0 0.0
        %2375 = vmatpush2.msra.mxu0 0.0
        %2376 = vmatprep.subr.mxu0 0.0
        %2377 = vmatpush2.msra.mxu0 0.0
        %2378 = vmatprep.subr.mxu0 0.0
        %2379 = vmatpush2.msra.mxu0 0.0
        %2380 = vmatprep.subr.mxu0 0.0
        %2381 = vmatpush2.msra.mxu0 0.0
        %2382 = vmatprep.subr.mxu0 0.0
        %2383 = vmatpush2.msra.mxu0 0.0
        %2384 = vmatprep.subr.mxu0 0.0
        %2385 = vmatpush2.msra.mxu0 0.0
        %2386 = vmatprep.subr.mxu0 0.0
        %2387 = vmatpush2.msra.mxu0 0.0
        %2388 = vmatprep.subr.mxu0 0.0
        %2389 = vmatpush2.msra.mxu0 0.0
        %2390 = vmatprep.subr.mxu0 0.0
        %2391 = vmatpush2.msra.mxu0 0.0
        %2392 = vmatprep.subr.mxu0 0.0
        %2393 = vmatpush2.msra.mxu0 0.0
        %2394 = vmatprep.subr.mxu0 0.0
        %2395 = vmatpush2.msra.mxu0 0.0
        %2396 = vmatprep.mubr.f32.mxu0 0.0
        %2397 = vmatmul.mubr.f32.gmra.mxu0 %v2327
        %v2398 = vpop.f32.mrf.mxu0
        %v2399 = vadd.f32 %v2323, %v2398
        %v2400 = vpop.f32.mrf.mxu0
        %2401 = vmatprep.mubr.f32.mxu0 0.0
        %2402 = vmatmul.mubr.f32.gmra.mxu0 %v2330
        %v2403 = vpop.f32.mrf.mxu0
        %v2404 = vadd.f32 %v2323, %v2403
        %v2405 = vpop.f32.mrf.mxu0
        %2406 = vdwg.mxu0
        %v2407 = vadd.f32 %v2399, %v2214
        %v2408 = vadd.f32 %v2404, %v2215
        %v2409 = vsel %vm632, %v2407, 0.0
        %2410 = vadd.xlane.f32.xlu0 %v2409
        %v2411 = vpop.xlane.xlu0 %2410
        %v2412 = vsel %vm632, %v2408, 0.0
        %2413 = vadd.xlane.f32.xlu0 %v2412
        %v2414 = vpop.xlane.xlu0 %2413
        %v2415 = vmul.f32 %v2411, %v2177
        %v2416 = vmul.f32 %v2414, %v2177
        %v2417 = vsub.f32 %v2407, %v2415
        %v2418 = vsub.f32 %v2408, %v2416
        %v2419 = vmul.f32 %v2417, %v2417
        %v2420 = vmul.f32 %v2418, %v2418
        %v2421 = vsel %vm632, %v2419, 0.0
        %2422 = vadd.xlane.f32.xlu0 %v2421
        %v2423 = vpop.xlane.xlu0 %2422
        %v2424 = vsel %vm632, %v2420, 0.0
        %2425 = vadd.xlane.f32.xlu0 %v2424
        %v2426 = vpop.xlane.xlu0 %2425
        %v2427 = vmul.f32 %v2423, %v2177
        %v2428 = vmul.f32 %v2426, %v2177
        %v2429 = vadd.f32 %v2427, 1e-05
        %v2430 = vadd.f32 %v2428, 1e-05
        %v2431 = vrsqrt.pop %v2429
        %v2432 = vrsqrt.pop %v2430
        %v2433 = vmul.f32 %v2417, %v2431
        %v2434 = vmul.f32 %v2418, %v2432
        %v2435 = vld [vmem:[%s611] sm:$0x1]
        %v2437 = vlaneseq
        %v2438 = vshrl.u32 %v2437, 7
        %v2439 = vsub.s32 0, %v2438
        %v2440 = vrot.slane %v2435, %v2439
        %v2442 = vmul.f32 %v2433, %v2440
        %v2443 = vmul.f32 %v2434, %v2440
        %v2444 = vld [vmem:[%s614] sm:$0x1]
        %v2446 = vlaneseq
        %v2447 = vshrl.u32 %v2446, 7
        %v2448 = vsub.s32 0, %v2447
        %v2449 = vrot.slane %v2444, %v2448
        %v2451 = vadd.f32 %v2442, %v2449
        %v2452 = vadd.f32 %v2443, %v2449
        %2453 = vst.msk [vmem:[#allocation2] sm:$0xff] %vm632, %v2451
        %2454 = vst.msk [vmem:[#allocation2 + $0x8] sm:$0xff] %vm632, %v2452
        %p2455 = scmp.eq.s32.totalorder %s27, 1
        // Predicated region
        $region85: #{tpu_custom_call.1} parent=71 // pred_check
          %p2456 = pneg %p2455
        $region86: #{tpu_custom_call.1} parent=71 // pred_check_branch
          %2458 = sbr.rel (%p2456) target = $region88
        $region87: #{tpu_custom_call.1} parent=71 // pred_region
          %2459 = vst.msk [vmem:[#allocation8] sm:$0xff] %vm632, %v2451
          %2460 = vst.msk [vmem:[#allocation8 + $0x8] sm:$0xff] %vm632, %v2452
        $region88: #{tpu_custom_call.1} parent=71 // pred_fallthru
          _
        // Predicated region
        $region89: #{tpu_custom_call.1} parent=71 // pred_check
          %p2461 = pneg %p368
        $region90: #{tpu_custom_call.1} parent=71 // pred_check_branch
          %2463 = sbr.rel (%p2461) target = $region92
        $region91: #{tpu_custom_call.1} parent=71 // pred_region
          %s2465 = ssub.s32 256, 256
          %2466 = vsyncadd [#allocation5], %s2465
          %s2467 = sshll.u32 [#allocation8], 4
          %s2468 = int_to_ptr.vmem [resolvable:$true] %s2467
          %2473 = dma.vmem_to_hbm [thread:$0]  %s2468, 256, %s13, [#allocation5], 128, 128, 8
        $region92: #{tpu_custom_call.1} parent=71 // pred_fallthru
          _
        // Predicated region
        $region93: #{tpu_custom_call.1} parent=71 // pred_check
          %p2474 = pneg %p368
        $region94: #{tpu_custom_call.1} parent=71 // pred_check_branch
          %2476 = sbr.rel (%p2474) target = $region96
        $region95: #{tpu_custom_call.1} parent=71 // pred_region
          %2477 = dma.done [#allocation5], 256
        $region96: #{tpu_custom_call.1} parent=71 // pred_fallthru
          _
      $region72: #{tpu_custom_call.1} parent=5 // pred_fallthru
        _
      %p2478 = scmp.le.s32.totalorder 2, %s22
      // Predicated region
      $region97: #{tpu_custom_call.1} parent=5 // pred_check
        %p2479 = pneg %p2478
      $region98: #{tpu_custom_call.1} parent=5 // pred_check_branch
        %2481 = sbr.rel (%p2479) target = $region100
      $region99: #{tpu_custom_call.1} parent=5 // pred_region
        %s2482 = ssub.s32 %s22, 2
      $region100: #{tpu_custom_call.1} parent=5 // pred_fallthru
        _
    $region6: #{tpu_custom_call.1} parent=1 // loop_footer
      %s26 = sadd.s32 1, %s22
    $region7: #{tpu_custom_call.1} parent=1 // loop_footer_branch
      %21 = sbr.rel target = $region3
    $region8: #{tpu_custom_call.1} parent=1 // loop_exit
      _
    %2483 = vsyncpa [#allocation4], 1
    %s2484 = scalar_lea.sflag [#allocation4], 1
    %2485 = vsyncpa %s2484, 1
    %2486 = vsyncpa [#allocation7], 1
    %2487 = vsyncpa [#allocation5], 1
    %s2488 = scalar_lea.sflag [#allocation5], 1
    %2489 = vsyncpa %s2488, 1

</llo_original>
